<compile_context>
chip_gen: v7x
topology: tpu7x:2x2x1
jax: 0.10.0
libtpu: 0.0.40
codegen_flags: <defaults>
</compile_context>

<pallas_src>
import functools
import math

import jax
import jax.numpy as jnp
from jax.experimental import pallas as pl
from jax.experimental.pallas import tpu as pltpu


def _layer_norm_f32(v, g_ref, b_ref, eps=1e-5):
    """f32 LayerNorm matching torch (unbiased=False)."""
    mu = jnp.mean(v, axis=-1, keepdims=True)
    var = jnp.mean(jnp.square(v - mu), axis=-1, keepdims=True)
    normed = (v - mu) * jax.lax.rsqrt(var + eps)
    return normed * g_ref[...].astype(jnp.float32) + b_ref[...].astype(jnp.float32)


def _transformer_block_kernel(
    x_ref,                    # (1, S, E)  one batch element, resident across qi steps
    ln1_g_ref, ln1_b_ref,     # (1, E)
    wqkv_ref,                 # (E, 3E)   [wq/sqrt(hd) | wk | wv]  (lane-dense)
    wo_ref, bo_ref,           # (E, E), (1, E)
    ln2_g_ref, ln2_b_ref,     # (1, E)
    w1_ref, b1_ref,           # (E, H), (1, H)
    w2_ref, b2_ref,           # (H, E), (1, E)
    o_ref,                    # (1, TQ, E)
    q_sc, k_sc, v_sc,         # VMEM scratch (S, E) each — whole-sequence Q/K/V
    *, num_heads,
):
    qi = pl.program_id(1)
    S, E = x_ref.shape[1], x_ref.shape[2]
    TQ = o_ref.shape[1]
    HD = E // num_heads
    wdt = wqkv_ref.dtype                       # MXU operand dtype (f32 or bf16)

    x_b = x_ref.at[0]                          # (S, E) ref view (zero-cost)

    # ---- once per batch element: LN1 + fused QKV projection over the full seq
    @pl.when(qi == 0)
    def _():
        xn1 = _layer_norm_f32(x_b[...].astype(jnp.float32), ln1_g_ref, ln1_b_ref)
        qkv = jnp.dot(xn1.astype(wdt), wqkv_ref[...],
                      preferred_element_type=jnp.float32)          # (S, 3E)
        q_sc[...] = qkv[:, :E].astype(q_sc.dtype)                  # already scaled
        k_sc[...] = qkv[:, E:2 * E].astype(k_sc.dtype)
        v_sc[...] = qkv[:, 2 * E:].astype(v_sc.dtype)

    # ---------------- attention for this query tile ----------------
    q_start = pl.multiple_of(qi * TQ, TQ)
    xq = x_b[pl.ds(q_start, TQ), :].astype(jnp.float32)            # (TQ, E) residual rows

    q_all = q_sc[pl.ds(q_start, TQ), :]                            # (TQ, E)
    k_all = k_sc[...]                                              # (S, E)
    v_all = v_sc[...]                                              # (S, E)

    # per-tile causal mask (diagonal always unmasked -> -inf masking is safe;
    # a padding mask extension would need a fully-masked-row guard).
    row = jax.lax.broadcasted_iota(jnp.int32, (TQ, S), 0) + q_start
    col = jax.lax.broadcasted_iota(jnp.int32, (TQ, S), 1)
    causal = col <= row

    # Per-head score/softmax/context stage.  NH is small in this demo, so a
    # static unroll is fine; for NH >= 8 convert to lax.fori_loop to bound
    # live ranges (per review).
    ctx_heads = []
    for h in range(num_heads):
        q_h = q_all[:, h * HD:(h + 1) * HD]                        # (TQ, HD)
        k_h = k_all[:, h * HD:(h + 1) * HD]                        # (S, HD)
        v_h = v_all[:, h * HD:(h + 1) * HD]                        # (S, HD)
        s = jax.lax.dot_general(q_h, k_h, (((1,), (1,)), ((), ())),
                                preferred_element_type=jnp.float32)  # (TQ, S)
        s = jnp.where(causal, s, -jnp.inf)
        m = jnp.max(s, axis=-1, keepdims=True)
        p = jnp.exp(s - m)
        denom = jnp.sum(p, axis=-1, keepdims=True)
        r = pl.reciprocal(denom, approx=True)                      # EUP, not VALU divide
        r = r * (2.0 - denom * r)                                  # one Newton step -> ~f32 accuracy
        ctx_h = jnp.dot(p.astype(wdt), v_h,
                        preferred_element_type=jnp.float32) * r    # (TQ, HD)
        ctx_heads.append(ctx_h)

    ctx = jnp.concatenate(ctx_heads, axis=-1)                      # (TQ, E)
    attn = (jnp.dot(ctx.astype(wdt), wo_ref[...],
                    preferred_element_type=jnp.float32)
            + bo_ref[...].astype(jnp.float32))

    x1 = xq + attn                 # residual (drop_shortcut = identity, eval mode)

    # ---------------- feed-forward branch ----------------
    xn2 = _layer_norm_f32(x1, ln2_g_ref, ln2_b_ref)
    h1 = (jnp.dot(xn2.astype(wdt), w1_ref[...], preferred_element_type=jnp.float32)
          + b1_ref[...].astype(jnp.float32))
    c = jnp.float32(math.sqrt(2.0 / math.pi))
    h1 = 0.5 * h1 * (1.0 + jnp.tanh(c * (h1 + 0.044715 * (h1 * h1 * h1))))
    ffn = (jnp.dot(h1.astype(wdt), w2_ref[...], preferred_element_type=jnp.float32)
           + b2_ref[...].astype(jnp.float32))

    o_ref[0] = (x1 + ffn).astype(o_ref.dtype)


def _pick_query_tile(S):
    for cand in (256, 128, 64, 32, 16, 8):
        if S % cand == 0:
            return cand
    return S   # small / irregular S: single tile (block equals full dim)


def _vmem_limit_bytes():
    # Per-generation VMEM budget: physical capacity minus Mosaic headroom.
    # v7x (64 MiB physical) -> ~52 MiB; v5e/v6e (128 MiB) -> ~112 MiB.
    try:
        cap = int(pltpu.get_tpu_info().vmem_capacity_bytes)
    except Exception:   # hardware-query fallback only; never masks kernel errors
        cap = 64 * 1024 * 1024
    return int(max(32 * 1024 * 1024, min(cap - 12 * 1024 * 1024, 112 * 1024 * 1024)))


def transformer_block(x, params, *, num_heads, weights_dtype=None):
    """Fused TransformerBlock forward. x: (B, S, E). Linear weights stored (in, out).

    weights_dtype: optional dtype (e.g. jnp.bfloat16) for MXU operands on v6e/v7x.
    """
    B, S, E = x.shape
    assert E % num_heads == 0, "emb_dim must be divisible by n_heads"
    HD = E // num_heads
    H = params["w1"].shape[1]
    TQ = _pick_query_tile(S)
    NQ = S // TQ

    wdt = jnp.dtype(weights_dtype) if weights_dtype is not None else params["wq"].dtype

    # Fold 1/sqrt(head_dim) into wq; fuse Q/K/V into one lane-dense (E, 3E) slab.
    scale = jnp.asarray(1.0 / math.sqrt(HD), params["wq"].dtype)
    wqkv = jnp.concatenate(
        [params["wq"] * scale, params["wk"], params["wv"]], axis=1).astype(wdt)

    def as_w(a, shape=None):
        a = a.astype(wdt)
        return a.reshape(shape) if shape is not None else a

    operands = (
        x,
        as_w(params["ln1_g"], (1, E)), as_w(params["ln1_b"], (1, E)),
        wqkv,
        as_w(params["wo"]), as_w(params["bo"], (1, E)),
        as_w(params["ln2_g"], (1, E)), as_w(params["ln2_b"], (1, E)),
        as_w(params["w1"]), as_w(params["b1"], (1, H)),
        as_w(params["w2"]), as_w(params["b2"], (1, E)),
    )

    # Dtype-aware advisory cost estimate (weights counted once).
    flops = B * (8 * S * E * E + 4 * S * S * E + 4 * S * E * H)
    transcendentals = B * S * (num_heads * S + H)
    param_bytes = sum(int(w.size) * w.dtype.itemsize for w in operands[1:])
    io_bytes = 2 * int(x.size) * x.dtype.itemsize
    cost = pl.CostEstimate(flops=int(flops), transcendentals=int(transcendentals),
                           bytes_accessed=int(io_bytes + param_bytes))

    def const_spec(shape):
        nd = len(shape)
        return pl.BlockSpec(shape, lambda b, qi, _n=nd: (0,) * _n)

    in_specs = [
        pl.BlockSpec((1, S, E), lambda b, qi: (b, 0, 0)),   # x: resident per batch elem
        const_spec((1, E)), const_spec((1, E)),             # ln1 scale/shift
        const_spec((E, 3 * E)),                             # fused wqkv
        const_spec((E, E)), const_spec((1, E)),             # wo, bo
        const_spec((1, E)), const_spec((1, E)),             # ln2 scale/shift
        const_spec((E, H)), const_spec((1, H)),             # w1, b1
        const_spec((H, E)), const_spec((1, E)),             # w2, b2
    ]

    kernel = functools.partial(_transformer_block_kernel, num_heads=num_heads)

    return pl.pallas_call(
        kernel,
        out_shape=jax.ShapeDtypeStruct((B, S, E), x.dtype),
        grid_spec=pltpu.PrefetchScalarGridSpec(
            num_scalar_prefetch=0,
            grid=(B, NQ),
            in_specs=in_specs,
            out_specs=pl.BlockSpec((1, TQ, E), lambda b, qi: (b, qi, 0)),
            scratch_shapes=[pltpu.VMEM((S, E), wdt),   # Q (pre-scaled)
                            pltpu.VMEM((S, E), wdt),   # K
                            pltpu.VMEM((S, E), wdt)],  # V
        ),
        compiler_params=pltpu.CompilerParams(
            dimension_semantics=("parallel", "arbitrary"),
            vmem_limit_bytes=_vmem_limit_bytes(),
        ),
        cost_estimate=cost,
    )(*operands)


def transformer_block_ref(x, params, num_heads, eps=1e-5):
    """Pure-JAX reference mirroring the PyTorch TransformerBlock (eval mode)."""
    with jax.default_matmul_precision("highest"):
        B, S, E = x.shape
        hd = E // num_heads
        xf = x.astype(jnp.float32)

        def ln(v, g, b):
            mu = v.mean(axis=-1, keepdims=True)
            var = ((v - mu) ** 2).mean(axis=-1, keepdims=True)
            return g * (v - mu) / jnp.sqrt(var + eps) + b

        shortcut = xf
        h = ln(xf, params["ln1_g"], params["ln1_b"])
        q = (h @ params["wq"]).reshape(B, S, num_heads, hd).transpose(0, 2, 1, 3)
        k = (h @ params["wk"]).reshape(B, S, num_heads, hd).transpose(0, 2, 1, 3)
        v = (h @ params["wv"]).reshape(B, S, num_heads, hd).transpose(0, 2, 1, 3)
        scores = q @ k.transpose(0, 1, 3, 2)
        mask = jnp.triu(jnp.ones((S, S), dtype=bool), k=1)
        scores = jnp.where(mask, -jnp.inf, scores)
        w = jax.nn.softmax(scores / float(hd) ** 0.5, axis=-1)
        ctx = (w @ v).transpose(0, 2, 1, 3).reshape(B, S, E)
        attn = ctx @ params["wo"] + params["bo"]
        x1 = shortcut + attn

        h2 = ln(x1, params["ln2_g"], params["ln2_b"])
        mid = h2 @ params["w1"] + params["b1"]
        c = jnp.sqrt(2.0 / jnp.pi)
        gelu = 0.5 * mid * (1.0 + jnp.tanh(c * (mid + 0.044715 * mid ** 3)))
        ffn = gelu @ params["w2"] + params["b2"]
        return x1 + ffn


if __name__ == "__main__":
    # Small demo config consistent with the PyTorch module; emb_dim=128 keeps
    # every activation/weight block lane-dense.
    cfg = {"emb_dim": 128, "context_length": 8, "n_heads": 4,
           "drop_rate": 0.0, "qkv_bias": False}
    B, S = 2, 8
    E = cfg["emb_dim"]
    H = 4 * E
    NH = cfg["n_heads"]

    key = jax.random.PRNGKey(0)
    ks = jax.random.split(key, 14)

    x = jax.random.normal(ks[0], (B, S, E), dtype=jnp.float32)

    def linear_w(k, fan_in, shape):
        return jax.random.normal(k, shape, dtype=jnp.float32) / jnp.sqrt(
            jnp.float32(fan_in))

    params = {
        "ln1_g": 1.0 + 0.1 * jax.random.normal(ks[1], (E,), dtype=jnp.float32),
        "ln1_b": 0.05 * jax.random.normal(ks[2], (E,), dtype=jnp.float32),
        "wq": linear_w(ks[3], E, (E, E)),
        "wk": linear_w(ks[4], E, (E, E)),
        "wv": linear_w(ks[5], E, (E, E)),
        "wo": linear_w(ks[6], E, (E, E)),
        "bo": 0.02 * jax.random.normal(ks[7], (E,), dtype=jnp.float32),
        "ln2_g": 1.0 + 0.1 * jax.random.normal(ks[8], (E,), dtype=jnp.float32),
        "ln2_b": 0.05 * jax.random.normal(ks[9], (E,), dtype=jnp.float32),
        "w1": linear_w(ks[10], E, (E, H)),
        "b1": 0.02 * jax.random.normal(ks[11], (H,), dtype=jnp.float32),
        "w2": linear_w(ks[12], H, (H, E)),
        "b2": 0.02 * jax.random.normal(ks[13], (E,), dtype=jnp.float32),
    }

    out = transformer_block(x, params, num_heads=NH)   # f32 demo (bf16 optional on v6e/v7x)
    out = jax.block_until_ready(out)

    ref = transformer_block_ref(x, params, NH)
    assert out.shape == (B, S, E)
    assert jnp.allclose(out.astype(jnp.float32), ref, atol=1e-3, rtol=1e-3), \
        "mismatch vs reference"
    print("KERNEL_OK")
</pallas_src>

<mosaic_0001>
module attributes {stable_mosaic.version = 11 : i64} {
  func.func @_transformer_block_kernel(%arg0: i32, %arg1: i32, %arg2: memref<1x8x128xf32, #tpu.memory_space<vmem>>, %arg3: memref<1x128xf32, #tpu.memory_space<vmem>>, %arg4: memref<1x128xf32, #tpu.memory_space<vmem>>, %arg5: memref<128x384xf32, #tpu.memory_space<vmem>>, %arg6: memref<128x128xf32, #tpu.memory_space<vmem>>, %arg7: memref<1x128xf32, #tpu.memory_space<vmem>>, %arg8: memref<1x128xf32, #tpu.memory_space<vmem>>, %arg9: memref<1x128xf32, #tpu.memory_space<vmem>>, %arg10: memref<128x512xf32, #tpu.memory_space<vmem>>, %arg11: memref<1x512xf32, #tpu.memory_space<vmem>>, %arg12: memref<512x128xf32, #tpu.memory_space<vmem>>, %arg13: memref<1x128xf32, #tpu.memory_space<vmem>>, %arg14: memref<1x8x128xf32, #tpu.memory_space<vmem>>, %arg15: memref<8x128xf32, #tpu.memory_space<vmem>>, %arg16: memref<8x128xf32, #tpu.memory_space<vmem>>, %arg17: memref<8x128xf32, #tpu.memory_space<vmem>>) attributes {dimension_semantics = [#tpu.dimension_semantics<parallel>, #tpu.dimension_semantics<arbitrary>], iteration_bounds = array<i64: 2, 1>, scalar_prefetch = 0 : i64, scratch_operands = 3 : i64, tpu.core_type = #tpu.core_type<tc>, window_params = [{transform_indices = @transform_0, window_bounds = array<i64: 1, 8, 128>}, {pipeline_mode = #tpu.pipeline_mode<synchronous>, transform_indices = @transform_1, window_bounds = array<i64: 1, 128>}, {pipeline_mode = #tpu.pipeline_mode<synchronous>, transform_indices = @transform_2, window_bounds = array<i64: 1, 128>}, {pipeline_mode = #tpu.pipeline_mode<synchronous>, transform_indices = @transform_3, window_bounds = array<i64: 128, 384>}, {pipeline_mode = #tpu.pipeline_mode<synchronous>, transform_indices = @transform_4, window_bounds = array<i64: 128, 128>}, {pipeline_mode = #tpu.pipeline_mode<synchronous>, transform_indices = @transform_5, window_bounds = array<i64: 1, 128>}, {pipeline_mode = #tpu.pipeline_mode<synchronous>, transform_indices = @transform_6, window_bounds = array<i64: 1, 128>}, {pipeline_mode = #tpu.pipeline_mode<synchronous>, transform_indices = @transform_7, window_bounds = array<i64: 1, 128>}, {pipeline_mode = #tpu.pipeline_mode<synchronous>, transform_indices = @transform_8, window_bounds = array<i64: 128, 512>}, {pipeline_mode = #tpu.pipeline_mode<synchronous>, transform_indices = @transform_9, window_bounds = array<i64: 1, 512>}, {pipeline_mode = #tpu.pipeline_mode<synchronous>, transform_indices = @transform_10, window_bounds = array<i64: 512, 128>}, {pipeline_mode = #tpu.pipeline_mode<synchronous>, transform_indices = @transform_11, window_bounds = array<i64: 1, 128>}, {transform_indices = @transform_12, window_bounds = array<i64: 1, 8, 128>}]} {
    %c0_i32 = arith.constant 0 : i32
    %0 = arith.cmpi eq, %arg1, %c0_i32 : i32
    %1 = arith.extui %0 : i1 to i32
    %c0_i32_0 = arith.constant 0 : i32
    %c0_i32_1 = arith.constant 0 : i32
    %2 = arith.cmpi ne, %1, %c0_i32_1 : i32
    scf.if %2 {
      %160 = arith.index_cast %c0_i32_0 : i32 to index
      %c0_64 = arith.constant 0 : index
      %c0_65 = arith.constant 0 : index
      %161 = vector.load %arg2[%160, %c0_64, %c0_65] : memref<1x8x128xf32, #tpu.memory_space<vmem>>, vector<1x8x128xf32>
      %162 = vector.shape_cast %161 : vector<1x8x128xf32> to vector<8x128xf32>
      %cst_66 = arith.constant dense<0.000000e+00> : vector<8xf32>
      %163 = vector.multi_reduction <add>, %162, %cst_66 [1] : vector<8x128xf32> to vector<8xf32>
      %164 = vector.shape_cast %163 : vector<8xf32> to vector<8x1xf32>
      %cst_67 = arith.constant 1.280000e+02 : f32
      %165 = vector.broadcast %cst_67 : f32 to vector<8x1xf32>
      %166 = arith.divf %164, %165 : vector<8x1xf32>
      %167 = vector.broadcast %166 : vector<8x1xf32> to vector<8x128xf32>
      %168 = arith.subf %162, %167 : vector<8x128xf32>
      %169 = arith.mulf %168, %168 : vector<8x128xf32>
      %cst_68 = arith.constant dense<0.000000e+00> : vector<8xf32>
      %170 = vector.multi_reduction <add>, %169, %cst_68 [1] : vector<8x128xf32> to vector<8xf32>
      %171 = vector.shape_cast %170 : vector<8xf32> to vector<8x1xf32>
      %cst_69 = arith.constant 1.280000e+02 : f32
      %172 = vector.broadcast %cst_69 : f32 to vector<8x1xf32>
      %173 = arith.divf %171, %172 : vector<8x1xf32>
      %174 = vector.broadcast %166 : vector<8x1xf32> to vector<8x128xf32>
      %175 = arith.subf %162, %174 : vector<8x128xf32>
      %cst_70 = arith.constant 9.99999974E-6 : f32
      %176 = vector.broadcast %cst_70 : f32 to vector<8x1xf32>
      %177 = arith.addf %173, %176 : vector<8x1xf32>
      %178 = math.rsqrt %177 : vector<8x1xf32>
      %179 = vector.broadcast %178 : vector<8x1xf32> to vector<8x128xf32>
      %180 = arith.mulf %175, %179 : vector<8x128xf32>
      %c0_71 = arith.constant 0 : index
      %c0_72 = arith.constant 0 : index
      %181 = vector.load %arg3[%c0_71, %c0_72] : memref<1x128xf32, #tpu.memory_space<vmem>>, vector<1x128xf32>
      %182 = vector.broadcast %181 : vector<1x128xf32> to vector<8x128xf32>
      %183 = arith.mulf %180, %182 : vector<8x128xf32>
      %c0_73 = arith.constant 0 : index
      %c0_74 = arith.constant 0 : index
      %184 = vector.load %arg4[%c0_73, %c0_74] : memref<1x128xf32, #tpu.memory_space<vmem>>, vector<1x128xf32>
      %185 = vector.broadcast %184 : vector<1x128xf32> to vector<8x128xf32>
      %186 = arith.addf %183, %185 : vector<8x128xf32>
      %c0_75 = arith.constant 0 : index
      %c0_76 = arith.constant 0 : index
      %187 = vector.load %arg5[%c0_75, %c0_76] : memref<128x384xf32, #tpu.memory_space<vmem>>, vector<128x384xf32>
      %cst_77 = arith.constant dense<0.000000e+00> : vector<8x384xf32>
      %188 = tpu.matmul %186, %187, %cst_77 {dimension_numbers = #tpu.dot_dimension_numbers<[1], [0], [0], [1], [0, 0, 1, 1], [], []>} : vector<8x128xf32>, vector<128x384xf32>, vector<8x384xf32> -> vector<8x384xf32>
      %189 = vector.extract_strided_slice %188 {offsets = [0, 0], sizes = [8, 128], strides = [1, 1]} : vector<8x384xf32> to vector<8x128xf32>
      %c0_78 = arith.constant 0 : index
      %c0_79 = arith.constant 0 : index
      %190 = vector.load %arg15[%c0_78, %c0_79] : memref<8x128xf32, #tpu.memory_space<vmem>>, vector<8x128xf32>
      tpu.vector_store %arg15[%c0_78, %c0_79], %189 {strides = array<i32>} : memref<8x128xf32, #tpu.memory_space<vmem>>, vector<8x128xf32>,
      %191 = vector.extract_strided_slice %188 {offsets = [0, 128], sizes = [8, 128], strides = [1, 1]} : vector<8x384xf32> to vector<8x128xf32>
      %c0_80 = arith.constant 0 : index
      %c0_81 = arith.constant 0 : index
      %192 = vector.load %arg16[%c0_80, %c0_81] : memref<8x128xf32, #tpu.memory_space<vmem>>, vector<8x128xf32>
      tpu.vector_store %arg16[%c0_80, %c0_81], %191 {strides = array<i32>} : memref<8x128xf32, #tpu.memory_space<vmem>>, vector<8x128xf32>,
      %193 = vector.extract_strided_slice %188 {offsets = [0, 256], sizes = [8, 128], strides = [1, 1]} : vector<8x384xf32> to vector<8x128xf32>
      %c0_82 = arith.constant 0 : index
      %c0_83 = arith.constant 0 : index
      %194 = vector.load %arg17[%c0_82, %c0_83] : memref<8x128xf32, #tpu.memory_space<vmem>>, vector<8x128xf32>
      tpu.vector_store %arg17[%c0_82, %c0_83], %193 {strides = array<i32>} : memref<8x128xf32, #tpu.memory_space<vmem>>, vector<8x128xf32>,
    } else {
    }
    %c8_i32 = arith.constant 8 : i32
    %3 = arith.muli %arg1, %c8_i32 : i32
    %4 = tpu.assume_multiple %3, 8 : i32
    %c0_i32_2 = arith.constant 0 : i32
    %c0_i32_3 = arith.constant 0 : i32
    %c0_i32_4 = arith.constant 0 : i32
    %5 = tpu.memref_slice %arg2[%c0_i32_2, %c0_i32_3, %c0_i32_4] : memref<1x8x128xf32, #tpu.memory_space<vmem>> -> memref<1x8x128xf32, #tpu.memory_space<vmem>>
    %6 = tpu.memref_squeeze %5 : memref<1x8x128xf32, #tpu.memory_space<vmem>> -> memref<8x128xf32, #tpu.memory_space<vmem>>
    %7 = arith.index_cast %4 : i32 to index
    %c0 = arith.constant 0 : index
    %8 = vector.load %6[%7, %c0] : memref<8x128xf32, #tpu.memory_space<vmem>>, vector<8x128xf32>
    %9 = arith.index_cast %4 : i32 to index
    %c0_5 = arith.constant 0 : index
    %10 = vector.load %arg15[%9, %c0_5] : memref<8x128xf32, #tpu.memory_space<vmem>>, vector<8x128xf32>
    %c0_6 = arith.constant 0 : index
    %c0_7 = arith.constant 0 : index
    %11 = vector.load %arg16[%c0_6, %c0_7] : memref<8x128xf32, #tpu.memory_space<vmem>>, vector<8x128xf32>
    %c0_8 = arith.constant 0 : index
    %c0_9 = arith.constant 0 : index
    %12 = vector.load %arg17[%c0_8, %c0_9] : memref<8x128xf32, #tpu.memory_space<vmem>>, vector<8x128xf32>
    %13 = tpu.iota {dimensions = array<i32: 0>} : vector<8x8xi32>
    %14 = vector.broadcast %4 : i32 to vector<8x8xi32>
    %15 = arith.addi %13, %14 : vector<8x8xi32>
    %16 = tpu.iota {dimensions = array<i32: 1>} : vector<8x8xi32>
    %17 = arith.cmpi sle, %16, %15 : vector<8x8xi32>
    %18 = vector.extract_strided_slice %10 {offsets = [0, 0], sizes = [8, 32], strides = [1, 1]} : vector<8x128xf32> to vector<8x32xf32>
    %19 = vector.extract_strided_slice %11 {offsets = [0, 0], sizes = [8, 32], strides = [1, 1]} : vector<8x128xf32> to vector<8x32xf32>
    %20 = vector.extract_strided_slice %12 {offsets = [0, 0], sizes = [8, 32], strides = [1, 1]} : vector<8x128xf32> to vector<8x32xf32>
    %cst = arith.constant dense<0.000000e+00> : vector<8x8xf32>
    %21 = tpu.matmul %18, %19, %cst {dimension_numbers = #tpu.dot_dimension_numbers<[1], [1], [0], [0], [0, 0, 1, 0], [], []>} : vector<8x32xf32>, vector<8x32xf32>, vector<8x8xf32> -> vector<8x8xf32>
    %cst_10 = arith.constant 0xFF800000 : f32
    %22 = vector.broadcast %cst_10 : f32 to vector<8x8xf32>
    %23 = arith.select %17, %21, %22 : vector<8x8xi1>, vector<8x8xf32>
    %cst_11 = arith.constant dense<0xFF800000> : vector<8xf32>
    %24 = vector.multi_reduction <maximumf>, %23, %cst_11 [1] : vector<8x8xf32> to vector<8xf32>
    %25 = vector.shape_cast %24 : vector<8xf32> to vector<8x1xf32>
    %26 = vector.broadcast %25 : vector<8x1xf32> to vector<8x8xf32>
    %27 = arith.subf %23, %26 : vector<8x8xf32>
    %28 = math.exp %27 : vector<8x8xf32>
    %cst_12 = arith.constant dense<0.000000e+00> : vector<8xf32>
    %29 = vector.multi_reduction <add>, %28, %cst_12 [1] : vector<8x8xf32> to vector<8xf32>
    %30 = vector.shape_cast %29 : vector<8xf32> to vector<8x1xf32>
    %31 = tpu.reciprocal %30 {approx = true} : vector<8x1xf32> -> vector<8x1xf32>
    %32 = arith.mulf %30, %31 : vector<8x1xf32>
    %cst_13 = arith.constant 2.000000e+00 : f32
    %33 = vector.broadcast %cst_13 : f32 to vector<8x1xf32>
    %34 = arith.subf %33, %32 : vector<8x1xf32>
    %35 = arith.mulf %31, %34 : vector<8x1xf32>
    %cst_14 = arith.constant dense<0.000000e+00> : vector<8x32xf32>
    %36 = tpu.matmul %28, %20, %cst_14 {dimension_numbers = #tpu.dot_dimension_numbers<[1], [0], [0], [1], [0, 0, 1, 1], [], []>} : vector<8x8xf32>, vector<8x32xf32>, vector<8x32xf32> -> vector<8x32xf32>
    %37 = vector.broadcast %35 : vector<8x1xf32> to vector<8x32xf32>
    %38 = arith.mulf %36, %37 : vector<8x32xf32>
    %39 = vector.extract_strided_slice %10 {offsets = [0, 32], sizes = [8, 32], strides = [1, 1]} : vector<8x128xf32> to vector<8x32xf32>
    %40 = vector.extract_strided_slice %11 {offsets = [0, 32], sizes = [8, 32], strides = [1, 1]} : vector<8x128xf32> to vector<8x32xf32>
    %41 = vector.extract_strided_slice %12 {offsets = [0, 32], sizes = [8, 32], strides = [1, 1]} : vector<8x128xf32> to vector<8x32xf32>
    %cst_15 = arith.constant dense<0.000000e+00> : vector<8x8xf32>
    %42 = tpu.matmul %39, %40, %cst_15 {dimension_numbers = #tpu.dot_dimension_numbers<[1], [1], [0], [0], [0, 0, 1, 0], [], []>} : vector<8x32xf32>, vector<8x32xf32>, vector<8x8xf32> -> vector<8x8xf32>
    %cst_16 = arith.constant 0xFF800000 : f32
    %43 = vector.broadcast %cst_16 : f32 to vector<8x8xf32>
    %44 = arith.select %17, %42, %43 : vector<8x8xi1>, vector<8x8xf32>
    %cst_17 = arith.constant dense<0xFF800000> : vector<8xf32>
    %45 = vector.multi_reduction <maximumf>, %44, %cst_17 [1] : vector<8x8xf32> to vector<8xf32>
    %46 = vector.shape_cast %45 : vector<8xf32> to vector<8x1xf32>
    %47 = vector.broadcast %46 : vector<8x1xf32> to vector<8x8xf32>
    %48 = arith.subf %44, %47 : vector<8x8xf32>
    %49 = math.exp %48 : vector<8x8xf32>
    %cst_18 = arith.constant dense<0.000000e+00> : vector<8xf32>
    %50 = vector.multi_reduction <add>, %49, %cst_18 [1] : vector<8x8xf32> to vector<8xf32>
    %51 = vector.shape_cast %50 : vector<8xf32> to vector<8x1xf32>
    %52 = tpu.reciprocal %51 {approx = true} : vector<8x1xf32> -> vector<8x1xf32>
    %53 = arith.mulf %51, %52 : vector<8x1xf32>
    %cst_19 = arith.constant 2.000000e+00 : f32
    %54 = vector.broadcast %cst_19 : f32 to vector<8x1xf32>
    %55 = arith.subf %54, %53 : vector<8x1xf32>
    %56 = arith.mulf %52, %55 : vector<8x1xf32>
    %cst_20 = arith.constant dense<0.000000e+00> : vector<8x32xf32>
    %57 = tpu.matmul %49, %41, %cst_20 {dimension_numbers = #tpu.dot_dimension_numbers<[1], [0], [0], [1], [0, 0, 1, 1], [], []>} : vector<8x8xf32>, vector<8x32xf32>, vector<8x32xf32> -> vector<8x32xf32>
    %58 = vector.broadcast %56 : vector<8x1xf32> to vector<8x32xf32>
    %59 = arith.mulf %57, %58 : vector<8x32xf32>
    %60 = vector.extract_strided_slice %10 {offsets = [0, 64], sizes = [8, 32], strides = [1, 1]} : vector<8x128xf32> to vector<8x32xf32>
    %61 = vector.extract_strided_slice %11 {offsets = [0, 64], sizes = [8, 32], strides = [1, 1]} : vector<8x128xf32> to vector<8x32xf32>
    %62 = vector.extract_strided_slice %12 {offsets = [0, 64], sizes = [8, 32], strides = [1, 1]} : vector<8x128xf32> to vector<8x32xf32>
    %cst_21 = arith.constant dense<0.000000e+00> : vector<8x8xf32>
    %63 = tpu.matmul %60, %61, %cst_21 {dimension_numbers = #tpu.dot_dimension_numbers<[1], [1], [0], [0], [0, 0, 1, 0], [], []>} : vector<8x32xf32>, vector<8x32xf32>, vector<8x8xf32> -> vector<8x8xf32>
    %cst_22 = arith.constant 0xFF800000 : f32
    %64 = vector.broadcast %cst_22 : f32 to vector<8x8xf32>
    %65 = arith.select %17, %63, %64 : vector<8x8xi1>, vector<8x8xf32>
    %cst_23 = arith.constant dense<0xFF800000> : vector<8xf32>
    %66 = vector.multi_reduction <maximumf>, %65, %cst_23 [1] : vector<8x8xf32> to vector<8xf32>
    %67 = vector.shape_cast %66 : vector<8xf32> to vector<8x1xf32>
    %68 = vector.broadcast %67 : vector<8x1xf32> to vector<8x8xf32>
    %69 = arith.subf %65, %68 : vector<8x8xf32>
    %70 = math.exp %69 : vector<8x8xf32>
    %cst_24 = arith.constant dense<0.000000e+00> : vector<8xf32>
    %71 = vector.multi_reduction <add>, %70, %cst_24 [1] : vector<8x8xf32> to vector<8xf32>
    %72 = vector.shape_cast %71 : vector<8xf32> to vector<8x1xf32>
    %73 = tpu.reciprocal %72 {approx = true} : vector<8x1xf32> -> vector<8x1xf32>
    %74 = arith.mulf %72, %73 : vector<8x1xf32>
    %cst_25 = arith.constant 2.000000e+00 : f32
    %75 = vector.broadcast %cst_25 : f32 to vector<8x1xf32>
    %76 = arith.subf %75, %74 : vector<8x1xf32>
    %77 = arith.mulf %73, %76 : vector<8x1xf32>
    %cst_26 = arith.constant dense<0.000000e+00> : vector<8x32xf32>
    %78 = tpu.matmul %70, %62, %cst_26 {dimension_numbers = #tpu.dot_dimension_numbers<[1], [0], [0], [1], [0, 0, 1, 1], [], []>} : vector<8x8xf32>, vector<8x32xf32>, vector<8x32xf32> -> vector<8x32xf32>
    %79 = vector.broadcast %77 : vector<8x1xf32> to vector<8x32xf32>
    %80 = arith.mulf %78, %79 : vector<8x32xf32>
    %81 = vector.extract_strided_slice %10 {offsets = [0, 96], sizes = [8, 32], strides = [1, 1]} : vector<8x128xf32> to vector<8x32xf32>
    %82 = vector.extract_strided_slice %11 {offsets = [0, 96], sizes = [8, 32], strides = [1, 1]} : vector<8x128xf32> to vector<8x32xf32>
    %83 = vector.extract_strided_slice %12 {offsets = [0, 96], sizes = [8, 32], strides = [1, 1]} : vector<8x128xf32> to vector<8x32xf32>
    %cst_27 = arith.constant dense<0.000000e+00> : vector<8x8xf32>
    %84 = tpu.matmul %81, %82, %cst_27 {dimension_numbers = #tpu.dot_dimension_numbers<[1], [1], [0], [0], [0, 0, 1, 0], [], []>} : vector<8x32xf32>, vector<8x32xf32>, vector<8x8xf32> -> vector<8x8xf32>
    %cst_28 = arith.constant 0xFF800000 : f32
    %85 = vector.broadcast %cst_28 : f32 to vector<8x8xf32>
    %86 = arith.select %17, %84, %85 : vector<8x8xi1>, vector<8x8xf32>
    %cst_29 = arith.constant dense<0xFF800000> : vector<8xf32>
    %87 = vector.multi_reduction <maximumf>, %86, %cst_29 [1] : vector<8x8xf32> to vector<8xf32>
    %88 = vector.shape_cast %87 : vector<8xf32> to vector<8x1xf32>
    %89 = vector.broadcast %88 : vector<8x1xf32> to vector<8x8xf32>
    %90 = arith.subf %86, %89 : vector<8x8xf32>
    %91 = math.exp %90 : vector<8x8xf32>
    %cst_30 = arith.constant dense<0.000000e+00> : vector<8xf32>
    %92 = vector.multi_reduction <add>, %91, %cst_30 [1] : vector<8x8xf32> to vector<8xf32>
    %93 = vector.shape_cast %92 : vector<8xf32> to vector<8x1xf32>
    %94 = tpu.reciprocal %93 {approx = true} : vector<8x1xf32> -> vector<8x1xf32>
    %95 = arith.mulf %93, %94 : vector<8x1xf32>
    %cst_31 = arith.constant 2.000000e+00 : f32
    %96 = vector.broadcast %cst_31 : f32 to vector<8x1xf32>
    %97 = arith.subf %96, %95 : vector<8x1xf32>
    %98 = arith.mulf %94, %97 : vector<8x1xf32>
    %cst_32 = arith.constant dense<0.000000e+00> : vector<8x32xf32>
    %99 = tpu.matmul %91, %83, %cst_32 {dimension_numbers = #tpu.dot_dimension_numbers<[1], [0], [0], [1], [0, 0, 1, 1], [], []>} : vector<8x8xf32>, vector<8x32xf32>, vector<8x32xf32> -> vector<8x32xf32>
    %100 = vector.broadcast %98 : vector<8x1xf32> to vector<8x32xf32>
    %101 = arith.mulf %99, %100 : vector<8x32xf32>
    %102 = tpu.concatenate %38, %59, %80, %101 in 1 : vector<8x32xf32>, vector<8x32xf32>, vector<8x32xf32>, vector<8x32xf32> -> vector<8x128xf32>
    %c0_33 = arith.constant 0 : index
    %c0_34 = arith.constant 0 : index
    %103 = vector.load %arg6[%c0_33, %c0_34] : memref<128x128xf32, #tpu.memory_space<vmem>>, vector<128x128xf32>
    %cst_35 = arith.constant dense<0.000000e+00> : vector<8x128xf32>
    %104 = tpu.matmul %102, %103, %cst_35 {dimension_numbers = #tpu.dot_dimension_numbers<[1], [0], [0], [1], [0, 0, 1, 1], [], []>} : vector<8x128xf32>, vector<128x128xf32>, vector<8x128xf32> -> vector<8x128xf32>
    %c0_36 = arith.constant 0 : index
    %c0_37 = arith.constant 0 : index
    %105 = vector.load %arg7[%c0_36, %c0_37] : memref<1x128xf32, #tpu.memory_space<vmem>>, vector<1x128xf32>
    %106 = vector.broadcast %105 : vector<1x128xf32> to vector<8x128xf32>
    %107 = arith.addf %104, %106 : vector<8x128xf32>
    %108 = arith.addf %8, %107 : vector<8x128xf32>
    %cst_38 = arith.constant dense<0.000000e+00> : vector<8xf32>
    %109 = vector.multi_reduction <add>, %108, %cst_38 [1] : vector<8x128xf32> to vector<8xf32>
    %110 = vector.shape_cast %109 : vector<8xf32> to vector<8x1xf32>
    %cst_39 = arith.constant 1.280000e+02 : f32
    %111 = vector.broadcast %cst_39 : f32 to vector<8x1xf32>
    %112 = arith.divf %110, %111 : vector<8x1xf32>
    %113 = vector.broadcast %112 : vector<8x1xf32> to vector<8x128xf32>
    %114 = arith.subf %108, %113 : vector<8x128xf32>
    %115 = arith.mulf %114, %114 : vector<8x128xf32>
    %cst_40 = arith.constant dense<0.000000e+00> : vector<8xf32>
    %116 = vector.multi_reduction <add>, %115, %cst_40 [1] : vector<8x128xf32> to vector<8xf32>
    %117 = vector.shape_cast %116 : vector<8xf32> to vector<8x1xf32>
    %cst_41 = arith.constant 1.280000e+02 : f32
    %118 = vector.broadcast %cst_41 : f32 to vector<8x1xf32>
    %119 = arith.divf %117, %118 : vector<8x1xf32>
    %120 = vector.broadcast %112 : vector<8x1xf32> to vector<8x128xf32>
    %121 = arith.subf %108, %120 : vector<8x128xf32>
    %cst_42 = arith.constant 9.99999974E-6 : f32
    %122 = vector.broadcast %cst_42 : f32 to vector<8x1xf32>
    %123 = arith.addf %119, %122 : vector<8x1xf32>
    %124 = math.rsqrt %123 : vector<8x1xf32>
    %125 = vector.broadcast %124 : vector<8x1xf32> to vector<8x128xf32>
    %126 = arith.mulf %121, %125 : vector<8x128xf32>
    %c0_43 = arith.constant 0 : index
    %c0_44 = arith.constant 0 : index
    %127 = vector.load %arg8[%c0_43, %c0_44] : memref<1x128xf32, #tpu.memory_space<vmem>>, vector<1x128xf32>
    %128 = vector.broadcast %127 : vector<1x128xf32> to vector<8x128xf32>
    %129 = arith.mulf %126, %128 : vector<8x128xf32>
    %c0_45 = arith.constant 0 : index
    %c0_46 = arith.constant 0 : index
    %130 = vector.load %arg9[%c0_45, %c0_46] : memref<1x128xf32, #tpu.memory_space<vmem>>, vector<1x128xf32>
    %131 = vector.broadcast %130 : vector<1x128xf32> to vector<8x128xf32>
    %132 = arith.addf %129, %131 : vector<8x128xf32>
    %c0_47 = arith.constant 0 : index
    %c0_48 = arith.constant 0 : index
    %133 = vector.load %arg10[%c0_47, %c0_48] : memref<128x512xf32, #tpu.memory_space<vmem>>, vector<128x512xf32>
    %cst_49 = arith.constant dense<0.000000e+00> : vector<8x512xf32>
    %134 = tpu.matmul %132, %133, %cst_49 {dimension_numbers = #tpu.dot_dimension_numbers<[1], [0], [0], [1], [0, 0, 1, 1], [], []>} : vector<8x128xf32>, vector<128x512xf32>, vector<8x512xf32> -> vector<8x512xf32>
    %c0_50 = arith.constant 0 : index
    %c0_51 = arith.constant 0 : index
    %135 = vector.load %arg11[%c0_50, %c0_51] : memref<1x512xf32, #tpu.memory_space<vmem>>, vector<1x512xf32>
    %136 = vector.broadcast %135 : vector<1x512xf32> to vector<8x512xf32>
    %137 = arith.addf %134, %136 : vector<8x512xf32>
    %cst_52 = arith.constant 5.000000e-01 : f32
    %138 = vector.broadcast %cst_52 : f32 to vector<8x512xf32>
    %139 = arith.mulf %138, %137 : vector<8x512xf32>
    %140 = arith.mulf %137, %137 : vector<8x512xf32>
    %141 = arith.mulf %140, %137 : vector<8x512xf32>
    %cst_53 = arith.constant 4.471500e-02 : f32
    %142 = vector.broadcast %cst_53 : f32 to vector<8x512xf32>
    %143 = arith.mulf %142, %141 : vector<8x512xf32>
    %144 = arith.addf %137, %143 : vector<8x512xf32>
    %cst_54 = arith.constant 0.797884583 : f32
    %145 = vector.broadcast %cst_54 : f32 to vector<8x512xf32>
    %146 = arith.mulf %145, %144 : vector<8x512xf32>
    %147 = math.tanh %146 : vector<8x512xf32>
    %cst_55 = arith.constant 1.000000e+00 : f32
    %148 = vector.broadcast %cst_55 : f32 to vector<8x512xf32>
    %149 = arith.addf %148, %147 : vector<8x512xf32>
    %150 = arith.mulf %139, %149 : vector<8x512xf32>
    %c0_56 = arith.constant 0 : index
    %c0_57 = arith.constant 0 : index
    %151 = vector.load %arg12[%c0_56, %c0_57] : memref<512x128xf32, #tpu.memory_space<vmem>>, vector<512x128xf32>
    %cst_58 = arith.constant dense<0.000000e+00> : vector<8x128xf32>
    %152 = tpu.matmul %150, %151, %cst_58 {dimension_numbers = #tpu.dot_dimension_numbers<[1], [0], [0], [1], [0, 0, 1, 1], [], []>} : vector<8x512xf32>, vector<512x128xf32>, vector<8x128xf32> -> vector<8x128xf32>
    %c0_59 = arith.constant 0 : index
    %c0_60 = arith.constant 0 : index
    %153 = vector.load %arg13[%c0_59, %c0_60] : memref<1x128xf32, #tpu.memory_space<vmem>>, vector<1x128xf32>
    %154 = vector.broadcast %153 : vector<1x128xf32> to vector<8x128xf32>
    %155 = arith.addf %152, %154 : vector<8x128xf32>
    %156 = arith.addf %108, %155 : vector<8x128xf32>
    %c0_61 = arith.constant 0 : index
    %c0_62 = arith.constant 0 : index
    %c0_63 = arith.constant 0 : index
    %157 = vector.load %arg14[%c0_61, %c0_62, %c0_63] : memref<1x8x128xf32, #tpu.memory_space<vmem>>, vector<1x8x128xf32>
    %158 = vector.shape_cast %157 : vector<1x8x128xf32> to vector<8x128xf32>
    %159 = vector.shape_cast %156 : vector<8x128xf32> to vector<1x8x128xf32>
    tpu.vector_store %arg14[%c0_61, %c0_62, %c0_63], %159 {strides = array<i32>} : memref<1x8x128xf32, #tpu.memory_space<vmem>>, vector<1x8x128xf32>,
    return
  }
  func.func @transform_0(%arg0: i32, %arg1: i32) -> (i32, i32, i32) {
    %c0_i32 = arith.constant 0 : i32
    %c0_i32_0 = arith.constant 0 : i32
    %c0_i32_1 = arith.constant 0 : i32
    return %arg0, %c0_i32, %c0_i32_0 : i32, i32, i32
  }
  func.func @transform_1(%arg0: i32, %arg1: i32) -> (i32, i32) {
    %c0_i32 = arith.constant 0 : i32
    %c0_i32_0 = arith.constant 0 : i32
    %c0_i32_1 = arith.constant 0 : i32
    return %c0_i32, %c0_i32_0 : i32, i32
  }
  func.func @transform_2(%arg0: i32, %arg1: i32) -> (i32, i32) {
    %c0_i32 = arith.constant 0 : i32
    %c0_i32_0 = arith.constant 0 : i32
    %c0_i32_1 = arith.constant 0 : i32
    return %c0_i32, %c0_i32_0 : i32, i32
  }
  func.func @transform_3(%arg0: i32, %arg1: i32) -> (i32, i32) {
    %c0_i32 = arith.constant 0 : i32
    %c0_i32_0 = arith.constant 0 : i32
    %c0_i32_1 = arith.constant 0 : i32
    return %c0_i32, %c0_i32_0 : i32, i32
  }
  func.func @transform_4(%arg0: i32, %arg1: i32) -> (i32, i32) {
    %c0_i32 = arith.constant 0 : i32
    %c0_i32_0 = arith.constant 0 : i32
    %c0_i32_1 = arith.constant 0 : i32
    return %c0_i32, %c0_i32_0 : i32, i32
  }
  func.func @transform_5(%arg0: i32, %arg1: i32) -> (i32, i32) {
    %c0_i32 = arith.constant 0 : i32
    %c0_i32_0 = arith.constant 0 : i32
    %c0_i32_1 = arith.constant 0 : i32
    return %c0_i32, %c0_i32_0 : i32, i32
  }
  func.func @transform_6(%arg0: i32, %arg1: i32) -> (i32, i32) {
    %c0_i32 = arith.constant 0 : i32
    %c0_i32_0 = arith.constant 0 : i32
    %c0_i32_1 = arith.constant 0 : i32
    return %c0_i32, %c0_i32_0 : i32, i32
  }
  func.func @transform_7(%arg0: i32, %arg1: i32) -> (i32, i32) {
    %c0_i32 = arith.constant 0 : i32
    %c0_i32_0 = arith.constant 0 : i32
    %c0_i32_1 = arith.constant 0 : i32
    return %c0_i32, %c0_i32_0 : i32, i32
  }
  func.func @transform_8(%arg0: i32, %arg1: i32) -> (i32, i32) {
    %c0_i32 = arith.constant 0 : i32
    %c0_i32_0 = arith.constant 0 : i32
    %c0_i32_1 = arith.constant 0 : i32
    return %c0_i32, %c0_i32_0 : i32, i32
  }
  func.func @transform_9(%arg0: i32, %arg1: i32) -> (i32, i32) {
    %c0_i32 = arith.constant 0 : i32
    %c0_i32_0 = arith.constant 0 : i32
    %c0_i32_1 = arith.constant 0 : i32
    return %c0_i32, %c0_i32_0 : i32, i32
  }
  func.func @transform_10(%arg0: i32, %arg1: i32) -> (i32, i32) {
    %c0_i32 = arith.constant 0 : i32
    %c0_i32_0 = arith.constant 0 : i32
    %c0_i32_1 = arith.constant 0 : i32
    return %c0_i32, %c0_i32_0 : i32, i32
  }
  func.func @transform_11(%arg0: i32, %arg1: i32) -> (i32, i32) {
    %c0_i32 = arith.constant 0 : i32
    %c0_i32_0 = arith.constant 0 : i32
    %c0_i32_1 = arith.constant 0 : i32
    return %c0_i32, %c0_i32_0 : i32, i32
  }
  func.func @transform_12(%arg0: i32, %arg1: i32) -> (i32, i32, i32) {
    %c0_i32 = arith.constant 0 : i32
    %c0_i32_0 = arith.constant 0 : i32
    return %arg0, %arg1, %c0_i32 : i32, i32, i32
  }
}

</mosaic_0001>

<llo_original>
// kernel: tpu_custom_call.1
$region0: #{tpu_custom_call.1}
  #allocation0 [shape = 'u32[]', space=smem, size = 0x4, offset = 0x4, fixed_abs, tag = 'smem constant byte address 0x4 - core index']
  #allocation1 [shape = 'u32[144,128]{1,0:T(1,128)}', space=vmem, size = 0x12000, scoped, tag = 'internal scratch']
  #allocation2 [shape = 'f32[8,128]{1,0:T(8,128)}', space=vmem, size = 0x1000, scoped, tag = 'scratch operand']
  #allocation3 [shape = 'f32[8,128]{1,0:T(8,128)}', space=vmem, size = 0x1000, scoped, tag = 'scratch operand']
  #allocation4 [shape = 'f32[8,128]{1,0:T(8,128)}', space=vmem, size = 0x1000, scoped, tag = 'scratch operand']
  %s0 = inlined_call_operand.hbm [shape: f32[2,8,128], index: 0, kind: input, shape index: {}]
  %s1 = inlined_call_operand.vmem [shape: f32[1,128], index: 1, kind: input, shape index: {}]
  %s2 = inlined_call_operand.vmem [shape: f32[1,128], index: 2, kind: input, shape index: {}]
  %s3 = inlined_call_operand.hbm [shape: f32[128,384], index: 3, kind: input, shape index: {}]
  %s4 = inlined_call_operand.hbm [shape: f32[128,128], index: 4, kind: input, shape index: {}]
  %s5 = inlined_call_operand.vmem [shape: f32[1,128], index: 5, kind: input, shape index: {}]
  %s6 = inlined_call_operand.vmem [shape: f32[1,128], index: 6, kind: input, shape index: {}]
  %s7 = inlined_call_operand.vmem [shape: f32[1,128], index: 7, kind: input, shape index: {}]
  %s8 = inlined_call_operand.hbm [shape: f32[128,512], index: 8, kind: input, shape index: {}]
  %s9 = inlined_call_operand.vmem [shape: f32[1,512], index: 9, kind: input, shape index: {}]
  %s10 = inlined_call_operand.hbm [shape: f32[512,128], index: 10, kind: input, shape index: {}]
  %s11 = inlined_call_operand.vmem [shape: f32[1,128], index: 11, kind: input, shape index: {}]
  %s12 = inlined_call_operand.hbm [shape: f32[2,8,128], index: 12, kind: output, shape index: {}]
  %s13 = sld [smem:[#allocation0]]
  $region105: #{tpu_custom_call.1} parent=0
    _
  %s15 = ssub.s32 1, %s13
  %s16 = scalar_select 0, %s15, %s13
  $region1: #{tpu_custom_call.1} parent=0
    #allocation5 [shape = 'u8[8192]{0}', space=vmem, size = 0x2000, scoped, tag = 'input window, operand 0']
    #allocation6 [shape = 's32[2]{0}', space=sflag, size = 0x8, scoped, tag = 'scoped memory for tpu_custom_call.1']
    #allocation7 [shape = 's32[2]{0}', space=sflag, size = 0x8, scoped, tag = 'scoped memory for tpu_custom_call.1']
    #allocation8 [shape = 'u8[196608]{0}', space=vmem, size = 0x30000, scoped, tag = 'input window, operand 3, single buffered']
    #allocation9 [shape = 's32[1]{0}', space=sflag, size = 0x4, scoped, tag = 'scoped memory for tpu_custom_call.1']
    #allocation10 [shape = 'u8[65536]{0}', space=vmem, size = 0x10000, scoped, tag = 'input window, operand 4, single buffered']
    #allocation11 [shape = 'u8[262144]{0}', space=vmem, size = 0x40000, scoped, tag = 'input window, operand 8, single buffered']
    #allocation12 [shape = 's32[1]{0}', space=sflag, size = 0x4, scoped, tag = 'scoped memory for tpu_custom_call.1']
    #allocation13 [shape = 'u8[262144]{0}', space=vmem, size = 0x40000, scoped, tag = 'input window, operand 10, single buffered']
    #allocation14 [shape = 'u8[8192]{0}', space=vmem, size = 0x2000, scoped, tag = 'output window, operand 0']
    %17 = vsyncpa [#allocation6], 0
    %s18 = scalar_lea.sflag [#allocation6], 1
    %19 = vsyncpa %s18, 0
    %20 = vsyncpa [#allocation9], 0
    %21 = vsyncpa [#allocation12], 0
    %22 = vsyncpa [#allocation7], 0
    %s23 = scalar_lea.sflag [#allocation7], 1
    %24 = vsyncpa %s23, 0
    loop: start=0, step=1, limit=4
    $region2: #{tpu_custom_call.1} parent=1 // loop_pre_header
      _
    $region3: #{tpu_custom_call.1} parent=1 // loop_header
      %s26 = sphi 0, %s30
      %p27 = scmp.ge.s32.totalorder %s26, 4
      %s33 = sphi 0, %s45
      %s34 = sphi 0, %s41
      %s35 = sphi 0, %s33
      %s36 = sphi 0, %s34
      %s37 = sphi 0, %s35
      %s38 = sphi 0, %s36
      %s48 = sphi 0, %s50
      %s51 = sphi 0, %s48
      %s52 = sphi 0, %s51
      %s68 = sphi 0, %s52
      %s72 = sphi 0, %s72
      %s74 = sphi 0, %s72
      %s75 = sphi 0, %s74
      %s89 = sphi 0, %s75
      %s93 = sphi 0, %s93
      %s95 = sphi 0, %s93
      %s96 = sphi 0, %s95
      %s110 = sphi 0, %s96
      %s114 = sphi 0, %s114
      %s116 = sphi 0, %s114
      %s117 = sphi 0, %s116
      %s131 = sphi 0, %s117
      %s135 = sphi 0, %s135
      %s137 = sphi 0, %s135
      %s138 = sphi 0, %s137
      %s152 = sphi 0, %s138
      %s156 = sphi 0, %s156
      %s158 = sphi 0, %s156
      %s159 = sphi 0, %s158
      %s173 = sphi 0, %s159
      %s177 = sphi 0, %s177
      %s179 = sphi 0, %s177
      %s180 = sphi 0, %s179
      %s194 = sphi 0, %s180
      %s198 = sphi 0, %s198
      %s200 = sphi 0, %s198
      %s201 = sphi 0, %s200
      %s215 = sphi 0, %s201
      %s219 = sphi 0, %s219
      %s221 = sphi 0, %s219
      %s222 = sphi 0, %s221
      %s236 = sphi 0, %s222
      %s240 = sphi 0, %s240
      %s242 = sphi 0, %s240
      %s243 = sphi 0, %s242
      %s257 = sphi 0, %s243
      %s261 = sphi 0, %s261
      %s263 = sphi 0, %s261
      %s264 = sphi 0, %s263
      %s278 = sphi 0, %s264
      %s282 = sphi 0, %s282
      %s284 = sphi 0, %s282
      %s285 = sphi 0, %s284
      %s299 = sphi 0, %s285
      %s307 = sphi 0, %s309
      %s310 = sphi 0, %s307
      %s311 = sphi 0, %s310
      %s327 = sphi 0, %s311
    $region4: #{tpu_custom_call.1} parent=1 // loop_header_branch
      %29 = sbr.rel (%p27) target = $region8
    $region5: #{tpu_custom_call.1} parent=1 // loop_body
      %s31 = ssub.s32 %s26, 1
      %s32 = ssub.s32 %s26, 2
      %s39 = sadd.s32 1, %s34
      %p40 = scmp.ge.s32.totalorder %s39, 1
      %s41 = scalar_select %p40, 0, %s39
      %s42 = sadd.s32 1, %s33
      %s43 = scalar_select %p40, %s42, %s33
      %p44 = scmp.ge.s32.totalorder %s43, 2
      %s45 = scalar_select %p44, 0, %s43
      %s46 = ssub.s32 %s33, %s45
      %p47 = scmp.eq.s32.totalorder %s46, 0
      %s49 = sadd.s32 %s48, 1
      %s50 = scalar_select %p47, %s48, %s49
      %p53 = pneg %p47
      %p54 = scmp.eq.s32.totalorder %s26, 1
      %p55 = por %p53, %p54
      %p56 = scmp.ne.s32.totalorder %s48, %s51
      %p57 = scmp.eq.s32.totalorder %s26, 0
      %p58 = por %p56, %p57
      %p59 = scmp.ne.s32.totalorder %s48, %s51
      %p60 = scmp.eq.s32.totalorder %s31, 1
      %p61 = por %p59, %p60
      %p62 = scmp.ne.s32.totalorder %s51, %s52
      %p63 = scmp.eq.s32.totalorder %s31, 0
      %p64 = por %p62, %p63
      %p65 = scmp.ne.s32.totalorder %s51, %s52
      %p66 = scmp.eq.s32.totalorder %s32, 1
      %p67 = por %p65, %p66
      %p69 = scmp.ne.s32.totalorder %s52, %s68
      %p70 = scmp.eq.s32.totalorder %s32, 0
      %p71 = por %p69, %p70
      %s73 = sadd.s32 %s72, 1
      %p76 = scmp.eq.s32.totalorder %s26, 1
      %p77 = scmp.ne.s32.totalorder %s72, %s74
      %p78 = scmp.eq.s32.totalorder %s26, 0
      %p79 = por %p77, %p78
      %p80 = scmp.ne.s32.totalorder %s72, %s74
      %p81 = scmp.eq.s32.totalorder %s31, 1
      %p82 = por %p80, %p81
      %p83 = scmp.ne.s32.totalorder %s74, %s75
      %p84 = scmp.eq.s32.totalorder %s31, 0
      %p85 = por %p83, %p84
      %p86 = scmp.ne.s32.totalorder %s74, %s75
      %p87 = scmp.eq.s32.totalorder %s32, 1
      %p88 = por %p86, %p87
      %p90 = scmp.ne.s32.totalorder %s75, %s89
      %p91 = scmp.eq.s32.totalorder %s32, 0
      %p92 = por %p90, %p91
      %s94 = sadd.s32 %s93, 1
      %p97 = scmp.eq.s32.totalorder %s26, 1
      %p98 = scmp.ne.s32.totalorder %s93, %s95
      %p99 = scmp.eq.s32.totalorder %s26, 0
      %p100 = por %p98, %p99
      %p101 = scmp.ne.s32.totalorder %s93, %s95
      %p102 = scmp.eq.s32.totalorder %s31, 1
      %p103 = por %p101, %p102
      %p104 = scmp.ne.s32.totalorder %s95, %s96
      %p105 = scmp.eq.s32.totalorder %s31, 0
      %p106 = por %p104, %p105
      %p107 = scmp.ne.s32.totalorder %s95, %s96
      %p108 = scmp.eq.s32.totalorder %s32, 1
      %p109 = por %p107, %p108
      %p111 = scmp.ne.s32.totalorder %s96, %s110
      %p112 = scmp.eq.s32.totalorder %s32, 0
      %p113 = por %p111, %p112
      %s115 = sadd.s32 %s114, 1
      %p118 = scmp.eq.s32.totalorder %s26, 1
      %p119 = scmp.ne.s32.totalorder %s114, %s116
      %p120 = scmp.eq.s32.totalorder %s26, 0
      %p121 = por %p119, %p120
      %p122 = scmp.ne.s32.totalorder %s114, %s116
      %p123 = scmp.eq.s32.totalorder %s31, 1
      %p124 = por %p122, %p123
      %p125 = scmp.ne.s32.totalorder %s116, %s117
      %p126 = scmp.eq.s32.totalorder %s31, 0
      %p127 = por %p125, %p126
      %p128 = scmp.ne.s32.totalorder %s116, %s117
      %p129 = scmp.eq.s32.totalorder %s32, 1
      %p130 = por %p128, %p129
      %p132 = scmp.ne.s32.totalorder %s117, %s131
      %p133 = scmp.eq.s32.totalorder %s32, 0
      %p134 = por %p132, %p133
      %s136 = sadd.s32 %s135, 1
      %p139 = scmp.eq.s32.totalorder %s26, 1
      %p140 = scmp.ne.s32.totalorder %s135, %s137
      %p141 = scmp.eq.s32.totalorder %s26, 0
      %p142 = por %p140, %p141
      %p143 = scmp.ne.s32.totalorder %s135, %s137
      %p144 = scmp.eq.s32.totalorder %s31, 1
      %p145 = por %p143, %p144
      %p146 = scmp.ne.s32.totalorder %s137, %s138
      %p147 = scmp.eq.s32.totalorder %s31, 0
      %p148 = por %p146, %p147
      %p149 = scmp.ne.s32.totalorder %s137, %s138
      %p150 = scmp.eq.s32.totalorder %s32, 1
      %p151 = por %p149, %p150
      %p153 = scmp.ne.s32.totalorder %s138, %s152
      %p154 = scmp.eq.s32.totalorder %s32, 0
      %p155 = por %p153, %p154
      %s157 = sadd.s32 %s156, 1
      %p160 = scmp.eq.s32.totalorder %s26, 1
      %p161 = scmp.ne.s32.totalorder %s156, %s158
      %p162 = scmp.eq.s32.totalorder %s26, 0
      %p163 = por %p161, %p162
      %p164 = scmp.ne.s32.totalorder %s156, %s158
      %p165 = scmp.eq.s32.totalorder %s31, 1
      %p166 = por %p164, %p165
      %p167 = scmp.ne.s32.totalorder %s158, %s159
      %p168 = scmp.eq.s32.totalorder %s31, 0
      %p169 = por %p167, %p168
      %p170 = scmp.ne.s32.totalorder %s158, %s159
      %p171 = scmp.eq.s32.totalorder %s32, 1
      %p172 = por %p170, %p171
      %p174 = scmp.ne.s32.totalorder %s159, %s173
      %p175 = scmp.eq.s32.totalorder %s32, 0
      %p176 = por %p174, %p175
      %s178 = sadd.s32 %s177, 1
      %p181 = scmp.eq.s32.totalorder %s26, 1
      %p182 = scmp.ne.s32.totalorder %s177, %s179
      %p183 = scmp.eq.s32.totalorder %s26, 0
      %p184 = por %p182, %p183
      %p185 = scmp.ne.s32.totalorder %s177, %s179
      %p186 = scmp.eq.s32.totalorder %s31, 1
      %p187 = por %p185, %p186
      %p188 = scmp.ne.s32.totalorder %s179, %s180
      %p189 = scmp.eq.s32.totalorder %s31, 0
      %p190 = por %p188, %p189
      %p191 = scmp.ne.s32.totalorder %s179, %s180
      %p192 = scmp.eq.s32.totalorder %s32, 1
      %p193 = por %p191, %p192
      %p195 = scmp.ne.s32.totalorder %s180, %s194
      %p196 = scmp.eq.s32.totalorder %s32, 0
      %p197 = por %p195, %p196
      %s199 = sadd.s32 %s198, 1
      %p202 = scmp.eq.s32.totalorder %s26, 1
      %p203 = scmp.ne.s32.totalorder %s198, %s200
      %p204 = scmp.eq.s32.totalorder %s26, 0
      %p205 = por %p203, %p204
      %p206 = scmp.ne.s32.totalorder %s198, %s200
      %p207 = scmp.eq.s32.totalorder %s31, 1
      %p208 = por %p206, %p207
      %p209 = scmp.ne.s32.totalorder %s200, %s201
      %p210 = scmp.eq.s32.totalorder %s31, 0
      %p211 = por %p209, %p210
      %p212 = scmp.ne.s32.totalorder %s200, %s201
      %p213 = scmp.eq.s32.totalorder %s32, 1
      %p214 = por %p212, %p213
      %p216 = scmp.ne.s32.totalorder %s201, %s215
      %p217 = scmp.eq.s32.totalorder %s32, 0
      %p218 = por %p216, %p217
      %s220 = sadd.s32 %s219, 1
      %p223 = scmp.eq.s32.totalorder %s26, 1
      %p224 = scmp.ne.s32.totalorder %s219, %s221
      %p225 = scmp.eq.s32.totalorder %s26, 0
      %p226 = por %p224, %p225
      %p227 = scmp.ne.s32.totalorder %s219, %s221
      %p228 = scmp.eq.s32.totalorder %s31, 1
      %p229 = por %p227, %p228
      %p230 = scmp.ne.s32.totalorder %s221, %s222
      %p231 = scmp.eq.s32.totalorder %s31, 0
      %p232 = por %p230, %p231
      %p233 = scmp.ne.s32.totalorder %s221, %s222
      %p234 = scmp.eq.s32.totalorder %s32, 1
      %p235 = por %p233, %p234
      %p237 = scmp.ne.s32.totalorder %s222, %s236
      %p238 = scmp.eq.s32.totalorder %s32, 0
      %p239 = por %p237, %p238
      %s241 = sadd.s32 %s240, 1
      %p244 = scmp.eq.s32.totalorder %s26, 1
      %p245 = scmp.ne.s32.totalorder %s240, %s242
      %p246 = scmp.eq.s32.totalorder %s26, 0
      %p247 = por %p245, %p246
      %p248 = scmp.ne.s32.totalorder %s240, %s242
      %p249 = scmp.eq.s32.totalorder %s31, 1
      %p250 = por %p248, %p249
      %p251 = scmp.ne.s32.totalorder %s242, %s243
      %p252 = scmp.eq.s32.totalorder %s31, 0
      %p253 = por %p251, %p252
      %p254 = scmp.ne.s32.totalorder %s242, %s243
      %p255 = scmp.eq.s32.totalorder %s32, 1
      %p256 = por %p254, %p255
      %p258 = scmp.ne.s32.totalorder %s243, %s257
      %p259 = scmp.eq.s32.totalorder %s32, 0
      %p260 = por %p258, %p259
      %s262 = sadd.s32 %s261, 1
      %p265 = scmp.eq.s32.totalorder %s26, 1
      %p266 = scmp.ne.s32.totalorder %s261, %s263
      %p267 = scmp.eq.s32.totalorder %s26, 0
      %p268 = por %p266, %p267
      %p269 = scmp.ne.s32.totalorder %s261, %s263
      %p270 = scmp.eq.s32.totalorder %s31, 1
      %p271 = por %p269, %p270
      %p272 = scmp.ne.s32.totalorder %s263, %s264
      %p273 = scmp.eq.s32.totalorder %s31, 0
      %p274 = por %p272, %p273
      %p275 = scmp.ne.s32.totalorder %s263, %s264
      %p276 = scmp.eq.s32.totalorder %s32, 1
      %p277 = por %p275, %p276
      %p279 = scmp.ne.s32.totalorder %s264, %s278
      %p280 = scmp.eq.s32.totalorder %s32, 0
      %p281 = por %p279, %p280
      %s283 = sadd.s32 %s282, 1
      %p286 = scmp.eq.s32.totalorder %s26, 1
      %p287 = scmp.ne.s32.totalorder %s282, %s284
      %p288 = scmp.eq.s32.totalorder %s26, 0
      %p289 = por %p287, %p288
      %p290 = scmp.ne.s32.totalorder %s282, %s284
      %p291 = scmp.eq.s32.totalorder %s31, 1
      %p292 = por %p290, %p291
      %p293 = scmp.ne.s32.totalorder %s284, %s285
      %p294 = scmp.eq.s32.totalorder %s31, 0
      %p295 = por %p293, %p294
      %p296 = scmp.ne.s32.totalorder %s284, %s285
      %p297 = scmp.eq.s32.totalorder %s32, 1
      %p298 = por %p296, %p297
      %p300 = scmp.ne.s32.totalorder %s285, %s299
      %p301 = scmp.eq.s32.totalorder %s32, 0
      %p302 = por %p300, %p301
      %s303 = ssub.s32 %s33, %s45
      %s304 = ssub.s32 %s34, %s41
      %s305 = sor.u32 %s303, %s304
      %p306 = scmp.eq.s32.totalorder %s305, 0
      %s308 = sadd.s32 %s307, 1
      %s309 = scalar_select %p306, %s307, %s308
      %p312 = pneg %p306
      %p313 = scmp.eq.s32.totalorder %s26, 1
      %p314 = por %p312, %p313
      %p315 = scmp.ne.s32.totalorder %s307, %s310
      %p316 = scmp.eq.s32.totalorder %s26, 0
      %p317 = por %p315, %p316
      %p318 = scmp.ne.s32.totalorder %s307, %s310
      %p319 = scmp.eq.s32.totalorder %s31, 1
      %p320 = por %p318, %p319
      %p321 = scmp.ne.s32.totalorder %s310, %s311
      %p322 = scmp.eq.s32.totalorder %s31, 0
      %p323 = por %p321, %p322
      %p324 = scmp.ne.s32.totalorder %s310, %s311
      %p325 = scmp.eq.s32.totalorder %s32, 1
      %p326 = por %p324, %p325
      %p328 = scmp.ne.s32.totalorder %s311, %s327
      %p329 = scmp.eq.s32.totalorder %s32, 0
      %p330 = por %p328, %p329
      %p331 = scmp.le.s32.totalorder 1, %s26
      %p332 = scmp.lt.s32.totalorder %s26, 3
      %p333 = pnand %p331, %p332
      %p334 = pneg %p333
      // Predicated region
      $region9: #{tpu_custom_call.1} parent=5 // pred_check
        _
      $region10: #{tpu_custom_call.1} parent=5 // pred_check_branch
        %336 = sbr.rel (%p333) target = $region12
      $region11: #{tpu_custom_call.1} parent=5 // pred_region
        %s337 = ssub.s32 %s26, 1
        // Predicated region
        $region13: #{tpu_custom_call.1} parent=11 // pred_check
          %p338 = pneg %p85
        $region14: #{tpu_custom_call.1} parent=11 // pred_check_branch
          %340 = sbr.rel (%p338) target = $region16
        $region15: #{tpu_custom_call.1} parent=11 // pred_region
          _
        $region16: #{tpu_custom_call.1} parent=11 // pred_fallthru
          _
        // Predicated region
        $region17: #{tpu_custom_call.1} parent=11 // pred_check
          %p341 = pneg %p106
        $region18: #{tpu_custom_call.1} parent=11 // pred_check_branch
          %343 = sbr.rel (%p341) target = $region20
        $region19: #{tpu_custom_call.1} parent=11 // pred_region
          _
        $region20: #{tpu_custom_call.1} parent=11 // pred_fallthru
          _
        // Predicated region
        $region21: #{tpu_custom_call.1} parent=11 // pred_check
          %p344 = pneg %p127
        $region22: #{tpu_custom_call.1} parent=11 // pred_check_branch
          %346 = sbr.rel (%p344) target = $region24
        $region23: #{tpu_custom_call.1} parent=11 // pred_region
          %s348 = ssub.s32 6144, 6144
          %349 = vsyncadd [#allocation9], %s348
          %s350 = sshll.u32 [#allocation8], 4
          %s351 = int_to_ptr.vmem [resolvable:$true] %s350
          %356 = dma.hbm_to_vmem [thread:$0]  %s3, 6144, %s351, [#allocation9], 384, 384, 24
        $region24: #{tpu_custom_call.1} parent=11 // pred_fallthru
          _
        // Predicated region
        $region25: #{tpu_custom_call.1} parent=11 // pred_check
          %p357 = pneg %p148
        $region26: #{tpu_custom_call.1} parent=11 // pred_check_branch
          %359 = sbr.rel (%p357) target = $region28
        $region27: #{tpu_custom_call.1} parent=11 // pred_region
          %s361 = ssub.s32 2048, 2048
          %362 = vsyncadd [#allocation9], %s361
          %s363 = sshll.u32 [#allocation10], 4
          %s364 = int_to_ptr.vmem [resolvable:$true] %s363
          %369 = dma.hbm_to_vmem [thread:$0]  %s4, 2048, %s364, [#allocation9], 128, 128, 8
        $region28: #{tpu_custom_call.1} parent=11 // pred_fallthru
          _
        // Predicated region
        $region29: #{tpu_custom_call.1} parent=11 // pred_check
          %p370 = pneg %p169
        $region30: #{tpu_custom_call.1} parent=11 // pred_check_branch
          %372 = sbr.rel (%p370) target = $region32
        $region31: #{tpu_custom_call.1} parent=11 // pred_region
          _
        $region32: #{tpu_custom_call.1} parent=11 // pred_fallthru
          _
        // Predicated region
        $region33: #{tpu_custom_call.1} parent=11 // pred_check
          %p373 = pneg %p190
        $region34: #{tpu_custom_call.1} parent=11 // pred_check_branch
          %375 = sbr.rel (%p373) target = $region36
        $region35: #{tpu_custom_call.1} parent=11 // pred_region
          _
        $region36: #{tpu_custom_call.1} parent=11 // pred_fallthru
          _
        // Predicated region
        $region37: #{tpu_custom_call.1} parent=11 // pred_check
          %p376 = pneg %p211
        $region38: #{tpu_custom_call.1} parent=11 // pred_check_branch
          %378 = sbr.rel (%p376) target = $region40
        $region39: #{tpu_custom_call.1} parent=11 // pred_region
          _
        $region40: #{tpu_custom_call.1} parent=11 // pred_fallthru
          _
        // Predicated region
        $region41: #{tpu_custom_call.1} parent=11 // pred_check
          %p379 = pneg %p232
        $region42: #{tpu_custom_call.1} parent=11 // pred_check_branch
          %381 = sbr.rel (%p379) target = $region44
        $region43: #{tpu_custom_call.1} parent=11 // pred_region
          %s383 = ssub.s32 8192, 8192
          %384 = vsyncadd [#allocation12], %s383
          %s385 = sshll.u32 [#allocation11], 4
          %s386 = int_to_ptr.vmem [resolvable:$true] %s385
          %391 = dma.hbm_to_vmem [thread:$0]  %s8, 8192, %s386, [#allocation12], 512, 512, 32
        $region44: #{tpu_custom_call.1} parent=11 // pred_fallthru
          _
        // Predicated region
        $region45: #{tpu_custom_call.1} parent=11 // pred_check
          %p392 = pneg %p253
        $region46: #{tpu_custom_call.1} parent=11 // pred_check_branch
          %394 = sbr.rel (%p392) target = $region48
        $region47: #{tpu_custom_call.1} parent=11 // pred_region
          _
        $region48: #{tpu_custom_call.1} parent=11 // pred_fallthru
          _
        // Predicated region
        $region49: #{tpu_custom_call.1} parent=11 // pred_check
          %p395 = pneg %p274
        $region50: #{tpu_custom_call.1} parent=11 // pred_check_branch
          %397 = sbr.rel (%p395) target = $region52
        $region51: #{tpu_custom_call.1} parent=11 // pred_region
          %s399 = ssub.s32 8192, 8192
          %400 = vsyncadd [#allocation12], %s399
          %s401 = sshll.u32 [#allocation13], 4
          %s402 = int_to_ptr.vmem [resolvable:$true] %s401
          %407 = dma.hbm_to_vmem [thread:$0]  %s10, 8192, %s402, [#allocation12], 128, 128, 8
        $region52: #{tpu_custom_call.1} parent=11 // pred_fallthru
          _
        // Predicated region
        $region53: #{tpu_custom_call.1} parent=11 // pred_check
          %p408 = pneg %p295
        $region54: #{tpu_custom_call.1} parent=11 // pred_check_branch
          %410 = sbr.rel (%p408) target = $region56
        $region55: #{tpu_custom_call.1} parent=11 // pred_region
          _
        $region56: #{tpu_custom_call.1} parent=11 // pred_fallthru
          _
      $region12: #{tpu_custom_call.1} parent=5 // pred_fallthru
        _
      %p411 = scmp.lt.s32.totalorder %s26, 2
      // Predicated region
      $region57: #{tpu_custom_call.1} parent=5 // pred_check
        %p412 = pneg %p411
      $region58: #{tpu_custom_call.1} parent=5 // pred_check_branch
        %414 = sbr.rel (%p412) target = $region60
      $region59: #{tpu_custom_call.1} parent=5 // pred_region
        // Predicated region
        $region61: #{tpu_custom_call.1} parent=59 // pred_check
          %p415 = pneg %p58
        $region62: #{tpu_custom_call.1} parent=59 // pred_check_branch
          %417 = sbr.rel (%p415) target = $region64
        $region63: #{tpu_custom_call.1} parent=59 // pred_region
          %s418 = sand.u32 %s48, 1
          %s419 = scalar_lea.sflag [#allocation6], %s418
          %s420 = sand.u32 %s48, 1
          %s421 = smul.addr %s420, 8
          %s422 = scalar_lea.vmem [#allocation5], %s421
          %s424 = ssub.s32 128, 128
          %425 = vsyncadd %s419, %s424
          %s426 = smul.addr %s33, 128
          %s427 = scalar_lea.hbm %s0, %s426
          %s429 = sshll.u32 %s422, 4
          %s430 = int_to_ptr.vmem [resolvable:$true] %s429
          %432 = dma.hbm_to_vmem [thread:$0]  %s427, 128, %s430, %s419
        $region64: #{tpu_custom_call.1} parent=59 // pred_fallthru
          _
      $region60: #{tpu_custom_call.1} parent=5 // pred_fallthru
        _
      %p433 = scmp.le.s32.totalorder 1, %s26
      %p434 = scmp.lt.s32.totalorder %s26, 3
      %p435 = pnand %p433, %p434
      %p436 = pneg %p435
      // Predicated region
      $region65: #{tpu_custom_call.1} parent=5 // pred_check
        _
      $region66: #{tpu_custom_call.1} parent=5 // pred_check_branch
        %438 = sbr.rel (%p435) target = $region68
      $region67: #{tpu_custom_call.1} parent=5 // pred_region
        %s439 = ssub.s32 %s26, 1
        %s440 = sand.u32 %s51, 1
        %s441 = scalar_lea.sflag [#allocation6], %s440
        %s442 = sand.u32 %s51, 1
        %s443 = smul.addr %s442, 8
        %s444 = scalar_lea.vmem [#allocation5], %s443
        // Predicated region
        $region69: #{tpu_custom_call.1} parent=67 // pred_check
          %p445 = pneg %p64
        $region70: #{tpu_custom_call.1} parent=67 // pred_check_branch
          %447 = sbr.rel (%p445) target = $region72
        $region71: #{tpu_custom_call.1} parent=67 // pred_region
          %448 = dma.done %s441, 128
        $region72: #{tpu_custom_call.1} parent=67 // pred_fallthru
          _
        // Predicated region
        $region73: #{tpu_custom_call.1} parent=67 // pred_check
          %p449 = pneg %p127
        $region74: #{tpu_custom_call.1} parent=67 // pred_check_branch
          %451 = sbr.rel (%p449) target = $region76
        $region75: #{tpu_custom_call.1} parent=67 // pred_region
          %452 = dma.done [#allocation9], 6144
        $region76: #{tpu_custom_call.1} parent=67 // pred_fallthru
          _
        // Predicated region
        $region77: #{tpu_custom_call.1} parent=67 // pred_check
          %p453 = pneg %p148
        $region78: #{tpu_custom_call.1} parent=67 // pred_check_branch
          %455 = sbr.rel (%p453) target = $region80
        $region79: #{tpu_custom_call.1} parent=67 // pred_region
          %456 = dma.done [#allocation9], 2048
        $region80: #{tpu_custom_call.1} parent=67 // pred_fallthru
          _
        // Predicated region
        $region81: #{tpu_custom_call.1} parent=67 // pred_check
          %p457 = pneg %p232
        $region82: #{tpu_custom_call.1} parent=67 // pred_check_branch
          %459 = sbr.rel (%p457) target = $region84
        $region83: #{tpu_custom_call.1} parent=67 // pred_region
          %460 = dma.done [#allocation12], 8192
        $region84: #{tpu_custom_call.1} parent=67 // pred_fallthru
          _
        // Predicated region
        $region85: #{tpu_custom_call.1} parent=67 // pred_check
          %p461 = pneg %p274
        $region86: #{tpu_custom_call.1} parent=67 // pred_check_branch
          %463 = sbr.rel (%p461) target = $region88
        $region87: #{tpu_custom_call.1} parent=67 // pred_region
          %464 = dma.done [#allocation12], 8192
        $region88: #{tpu_custom_call.1} parent=67 // pred_fallthru
          _
        %s465 = sand.u32 %s51, 1
        %s466 = scalar_lea.sflag [#allocation6], %s465
        %s467 = sand.u32 %s51, 1
        %s468 = smul.addr %s467, 8
        %s469 = scalar_lea.vmem [#allocation5], %s468
        %p470 = pneg %p64
        %p471 = pneg %p61
        %p472 = pneg %p85
        %p473 = pneg %p82
        %p474 = pneg %p106
        %p475 = pneg %p103
        %p476 = pneg %p127
        %p477 = pneg %p124
        %p478 = pneg %p148
        %p479 = pneg %p145
        %p480 = pneg %p169
        %p481 = pneg %p166
        %p482 = pneg %p190
        %p483 = pneg %p187
        %p484 = pneg %p211
        %p485 = pneg %p208
        %p486 = pneg %p232
        %p487 = pneg %p229
        %p488 = pneg %p253
        %p489 = pneg %p250
        %p490 = pneg %p274
        %p491 = pneg %p271
        %p492 = pneg %p295
        %p493 = pneg %p292
        %p494 = pneg %p323
        %p495 = pneg %p320
        %s496 = sand.u32 %s310, 1
        %s497 = scalar_lea.sflag [#allocation7], %s496
        %s498 = sand.u32 %s310, 1
        %s499 = smul.addr %s498, 8
        %s500 = scalar_lea.vmem [#allocation14], %s499
        %p501 = scmp.eq.s32.totalorder %s36, 0
        // Predicated region
        $region89: #{tpu_custom_call.1} parent=67 // pred_check
          %p502 = pneg %p501
        $region90: #{tpu_custom_call.1} parent=67 // pred_check_branch
          %504 = sbr.rel (%p502) target = $region92
        $region91: #{tpu_custom_call.1} parent=67 // pred_region
          %v505 = vld [vmem:[%s444] sm:$0xff]
          %506 = vadd.xlane.f32.xlu0 %v505
          %v507 = vpop.xlane.xlu0 %506
          %v508 = vrcp.pop 128.0
          %v509 = vmul.f32 %v507, %v508
          %v510 = vsub.f32 %v505, %v509
          %v511 = vmul.f32 %v510, %v510
          %512 = vadd.xlane.f32.xlu0 %v511
          %v513 = vpop.xlane.xlu0 %512
          %v514 = vmul.f32 %v513, %v508
          %v515 = vadd.f32 %v514, 1e-05
          %v516 = vrsqrt.pop %v515
          %v517 = vmul.f32 %v510, %v516
          %v518 = vld [vmem:[%s1] sm:$0x1]
          %v520 = vlaneseq
          %v521 = vshrl.u32 %v520, 7
          %v522 = vsub.s32 0, %v521
          %v523 = vrot.slane %v518, %v522
          %v525 = vmul.f32 %v517, %v523
          %v526 = vld [vmem:[%s2] sm:$0x1]
          %v528 = vlaneseq
          %v529 = vshrl.u32 %v528, 7
          %v530 = vsub.s32 0, %v529
          %v531 = vrot.slane %v526, %v530
          %v533 = vadd.f32 %v525, %v531
          %v534 = vld [vmem:[#allocation8] sm:$0xff]
          %v535 = vld [vmem:[#allocation8 + $0x8] sm:$0xff]
          %v536 = vld [vmem:[#allocation8 + $0x10] sm:$0xff]
          %v537 = vld [vmem:[#allocation8 + $0x18] sm:$0xff]
          %v538 = vld [vmem:[#allocation8 + $0x20] sm:$0xff]
          %v539 = vld [vmem:[#allocation8 + $0x28] sm:$0xff]
          %v540 = vld [vmem:[#allocation8 + $0x30] sm:$0xff]
          %v541 = vld [vmem:[#allocation8 + $0x38] sm:$0xff]
          %v542 = vld [vmem:[#allocation8 + $0x40] sm:$0xff]
          %v543 = vld [vmem:[#allocation8 + $0x48] sm:$0xff]
          %v544 = vld [vmem:[#allocation8 + $0x50] sm:$0xff]
          %v545 = vld [vmem:[#allocation8 + $0x58] sm:$0xff]
          %v546 = vld [vmem:[#allocation8 + $0x60] sm:$0xff]
          %v547 = vld [vmem:[#allocation8 + $0x68] sm:$0xff]
          %v548 = vld [vmem:[#allocation8 + $0x70] sm:$0xff]
          %v549 = vld [vmem:[#allocation8 + $0x78] sm:$0xff]
          %v550 = vld [vmem:[#allocation8 + $0x80] sm:$0xff]
          %v551 = vld [vmem:[#allocation8 + $0x88] sm:$0xff]
          %v552 = vld [vmem:[#allocation8 + $0x90] sm:$0xff]
          %v553 = vld [vmem:[#allocation8 + $0x98] sm:$0xff]
          %v554 = vld [vmem:[#allocation8 + $0xa0] sm:$0xff]
          %v555 = vld [vmem:[#allocation8 + $0xa8] sm:$0xff]
          %v556 = vld [vmem:[#allocation8 + $0xb0] sm:$0xff]
          %v557 = vld [vmem:[#allocation8 + $0xb8] sm:$0xff]
          %v558 = vld [vmem:[#allocation8 + $0xc0] sm:$0xff]
          %v559 = vld [vmem:[#allocation8 + $0xc8] sm:$0xff]
          %v560 = vld [vmem:[#allocation8 + $0xd0] sm:$0xff]
          %v561 = vld [vmem:[#allocation8 + $0xd8] sm:$0xff]
          %v562 = vld [vmem:[#allocation8 + $0xe0] sm:$0xff]
          %v563 = vld [vmem:[#allocation8 + $0xe8] sm:$0xff]
          %v564 = vld [vmem:[#allocation8 + $0xf0] sm:$0xff]
          %v565 = vld [vmem:[#allocation8 + $0xf8] sm:$0xff]
          %v566 = vld [vmem:[#allocation8 + $0x100] sm:$0xff]
          %v567 = vld [vmem:[#allocation8 + $0x108] sm:$0xff]
          %v568 = vld [vmem:[#allocation8 + $0x110] sm:$0xff]
          %v569 = vld [vmem:[#allocation8 + $0x118] sm:$0xff]
          %v570 = vld [vmem:[#allocation8 + $0x120] sm:$0xff]
          %v571 = vld [vmem:[#allocation8 + $0x128] sm:$0xff]
          %v572 = vld [vmem:[#allocation8 + $0x130] sm:$0xff]
          %v573 = vld [vmem:[#allocation8 + $0x138] sm:$0xff]
          %v574 = vld [vmem:[#allocation8 + $0x140] sm:$0xff]
          %v575 = vld [vmem:[#allocation8 + $0x148] sm:$0xff]
          %v576 = vld [vmem:[#allocation8 + $0x150] sm:$0xff]
          %v577 = vld [vmem:[#allocation8 + $0x158] sm:$0xff]
          %v578 = vld [vmem:[#allocation8 + $0x160] sm:$0xff]
          %v579 = vld [vmem:[#allocation8 + $0x168] sm:$0xff]
          %v580 = vld [vmem:[#allocation8 + $0x170] sm:$0xff]
          %v581 = vld [vmem:[#allocation8 + $0x178] sm:$0xff]
          %582 = vmatprep.subr.mxu0 %v535
          %583 = vmatpush1.msra.mxu0 %v534
          %584 = vmatprep.subr.mxu0 %v538
          %585 = vmatpush1.msra.mxu0 %v537
          %586 = vmatprep.subr.mxu0 %v541
          %587 = vmatpush1.msra.mxu0 %v540
          %588 = vmatprep.subr.mxu0 %v544
          %589 = vmatpush1.msra.mxu0 %v543
          %590 = vmatprep.subr.mxu0 %v547
          %591 = vmatpush1.msra.mxu0 %v546
          %592 = vmatprep.subr.mxu0 %v550
          %593 = vmatpush1.msra.mxu0 %v549
          %594 = vmatprep.subr.mxu0 %v553
          %595 = vmatpush1.msra.mxu0 %v552
          %596 = vmatprep.subr.mxu0 %v556
          %597 = vmatpush1.msra.mxu0 %v555
          %598 = vmatprep.subr.mxu0 %v559
          %599 = vmatpush1.msra.mxu0 %v558
          %600 = vmatprep.subr.mxu0 %v562
          %601 = vmatpush1.msra.mxu0 %v561
          %602 = vmatprep.subr.mxu0 %v565
          %603 = vmatpush1.msra.mxu0 %v564
          %604 = vmatprep.subr.mxu0 %v568
          %605 = vmatpush1.msra.mxu0 %v567
          %606 = vmatprep.subr.mxu0 %v571
          %607 = vmatpush1.msra.mxu0 %v570
          %608 = vmatprep.subr.mxu0 %v574
          %609 = vmatpush1.msra.mxu0 %v573
          %610 = vmatprep.subr.mxu0 %v577
          %611 = vmatpush1.msra.mxu0 %v576
          %612 = vmatprep.subr.mxu0 %v580
          %613 = vmatpush1.msra.mxu0 %v579
          %614 = vmatprep.subr.mxu0 0.0
          %615 = vmatpush1.msra.mxu0 0.0
          %616 = vmatprep.subr.mxu0 0.0
          %617 = vmatpush1.msra.mxu0 0.0
          %618 = vmatprep.subr.mxu0 0.0
          %619 = vmatpush1.msra.mxu0 0.0
          %620 = vmatprep.subr.mxu0 0.0
          %621 = vmatpush1.msra.mxu0 0.0
          %622 = vmatprep.subr.mxu0 0.0
          %623 = vmatpush1.msra.mxu0 0.0
          %624 = vmatprep.subr.mxu0 0.0
          %625 = vmatpush1.msra.mxu0 0.0
          %626 = vmatprep.subr.mxu0 0.0
          %627 = vmatpush1.msra.mxu0 0.0
          %628 = vmatprep.subr.mxu0 0.0
          %629 = vmatpush1.msra.mxu0 0.0
          %630 = vmatprep.subr.mxu0 0.0
          %631 = vmatpush1.msra.mxu0 0.0
          %632 = vmatprep.subr.mxu0 0.0
          %633 = vmatpush1.msra.mxu0 0.0
          %634 = vmatprep.subr.mxu0 0.0
          %635 = vmatpush1.msra.mxu0 0.0
          %636 = vmatprep.subr.mxu0 0.0
          %637 = vmatpush1.msra.mxu0 0.0
          %638 = vmatprep.subr.mxu0 0.0
          %639 = vmatpush1.msra.mxu0 0.0
          %640 = vmatprep.subr.mxu0 0.0
          %641 = vmatpush1.msra.mxu0 0.0
          %642 = vmatprep.subr.mxu0 0.0
          %643 = vmatpush1.msra.mxu0 0.0
          %644 = vmatprep.subr.mxu0 0.0
          %645 = vmatpush1.msra.mxu0 0.0
          %646 = vmatprep.mubr.f32.mxu0 0.0
          %647 = vmatmul.mubr.f32.gmra.mrb[0].mxu0 %v533
          %v648 = vpop.f32.mrb[0].mxu0
          %v649 = vadd.f32 0.0, %v648
          %v650 = vpop.f32.mrb[0].mxu0
          %v651 = vadd.f32 0.0, %v650
          %652 = vdwg.mxu0
          %653 = vmatprep.subr.mxu0 0.0
          %654 = vmatpush1.msra.mxu0 %v536
          %655 = vmatprep.subr.mxu0 0.0
          %656 = vmatpush1.msra.mxu0 %v539
          %657 = vmatprep.subr.mxu0 0.0
          %658 = vmatpush1.msra.mxu0 %v542
          %659 = vmatprep.subr.mxu0 0.0
          %660 = vmatpush1.msra.mxu0 %v545
          %661 = vmatprep.subr.mxu0 0.0
          %662 = vmatpush1.msra.mxu0 %v548
          %663 = vmatprep.subr.mxu0 0.0
          %664 = vmatpush1.msra.mxu0 %v551
          %665 = vmatprep.subr.mxu0 0.0
          %666 = vmatpush1.msra.mxu0 %v554
          %667 = vmatprep.subr.mxu0 0.0
          %668 = vmatpush1.msra.mxu0 %v557
          %669 = vmatprep.subr.mxu0 0.0
          %670 = vmatpush1.msra.mxu0 %v560
          %671 = vmatprep.subr.mxu0 0.0
          %672 = vmatpush1.msra.mxu0 %v563
          %673 = vmatprep.subr.mxu0 0.0
          %674 = vmatpush1.msra.mxu0 %v566
          %675 = vmatprep.subr.mxu0 0.0
          %676 = vmatpush1.msra.mxu0 %v569
          %677 = vmatprep.subr.mxu0 0.0
          %678 = vmatpush1.msra.mxu0 %v572
          %679 = vmatprep.subr.mxu0 0.0
          %680 = vmatpush1.msra.mxu0 %v575
          %681 = vmatprep.subr.mxu0 0.0
          %682 = vmatpush1.msra.mxu0 %v578
          %683 = vmatprep.subr.mxu0 0.0
          %684 = vmatpush1.msra.mxu0 %v581
          %685 = vmatprep.subr.mxu0 0.0
          %686 = vmatpush1.msra.mxu0 0.0
          %687 = vmatprep.subr.mxu0 0.0
          %688 = vmatpush1.msra.mxu0 0.0
          %689 = vmatprep.subr.mxu0 0.0
          %690 = vmatpush1.msra.mxu0 0.0
          %691 = vmatprep.subr.mxu0 0.0
          %692 = vmatpush1.msra.mxu0 0.0
          %693 = vmatprep.subr.mxu0 0.0
          %694 = vmatpush1.msra.mxu0 0.0
          %695 = vmatprep.subr.mxu0 0.0
          %696 = vmatpush1.msra.mxu0 0.0
          %697 = vmatprep.subr.mxu0 0.0
          %698 = vmatpush1.msra.mxu0 0.0
          %699 = vmatprep.subr.mxu0 0.0
          %700 = vmatpush1.msra.mxu0 0.0
          %701 = vmatprep.subr.mxu0 0.0
          %702 = vmatpush1.msra.mxu0 0.0
          %703 = vmatprep.subr.mxu0 0.0
          %704 = vmatpush1.msra.mxu0 0.0
          %705 = vmatprep.subr.mxu0 0.0
          %706 = vmatpush1.msra.mxu0 0.0
          %707 = vmatprep.subr.mxu0 0.0
          %708 = vmatpush1.msra.mxu0 0.0
          %709 = vmatprep.subr.mxu0 0.0
          %710 = vmatpush1.msra.mxu0 0.0
          %711 = vmatprep.subr.mxu0 0.0
          %712 = vmatpush1.msra.mxu0 0.0
          %713 = vmatprep.subr.mxu0 0.0
          %714 = vmatpush1.msra.mxu0 0.0
          %715 = vmatprep.subr.mxu0 0.0
          %716 = vmatpush1.msra.mxu0 0.0
          %717 = vmatprep.mubr.f32.mxu0 0.0
          %718 = vmatmul.mubr.f32.gmra.mrb[0].mxu0 %v533
          %v719 = vpop.f32.mrb[0].mxu0
          %v720 = vadd.f32 0.0, %v719
          %v721 = vpop.f32.mrb[0].mxu0
          %722 = vdwg.mxu0
          %723 = vst [vmem:[#allocation2] sm:$0xff] %v649
          %724 = vst [vmem:[#allocation3] sm:$0xff] %v651
          %725 = vst [vmem:[#allocation4] sm:$0xff] %v720
        $region92: #{tpu_custom_call.1} parent=67 // pred_fallthru
          _
        %s726 = smul.u32 %s36, 8
        %s727 = scalar_lea.vmem %s444, %s726 [#allocation5]
        %v728 = vld [vmem:[%s727] sm:$0xff]
        %s729 = scalar_lea.vmem [#allocation2], %s726
        %v730 = vld [vmem:[%s729] sm:$0xff]
        %v731 = vld [vmem:[#allocation3] sm:$0xff]
        %v732 = vld [vmem:[#allocation4] sm:$0xff]
        %v733 = vlaneseq
        %v734 = vshrl.u32 %v733, 7
        %v735 = vstv %s726
        %v736 = vadd.s32 %v734, %v735
        %v737 = vlaneseq
        %v738 = vand.u32 %v737, 127
        %vm739 = vcmp.le.s32.totalorder %v738, %v736
        %vm740 = vcmask 261120
        %v742 = vsel %vm740, %v730, 0
        %v745 = vsel %vm740, %v731, 0
        %747 = vmatprep.subr.mxu0 0.0
        %748 = vmatpush1.xpose.msra.mxu0 %v745
        %749 = vmatprep.subr.mxu0 0.0
        %750 = vmatpush1.xpose.msra.mxu0 0.0
        %751 = vmatprep.subr.mxu0 0.0
        %752 = vmatpush1.xpose.msra.mxu0 0.0
        %753 = vmatprep.subr.mxu0 0.0
        %754 = vmatpush1.xpose.msra.mxu0 0.0
        %755 = vmatprep.subr.mxu0 0.0
        %756 = vmatpush1.xpose.msra.mxu0 0.0
        %757 = vmatprep.subr.mxu0 0.0
        %758 = vmatpush1.xpose.msra.mxu0 0.0
        %759 = vmatprep.subr.mxu0 0.0
        %760 = vmatpush1.xpose.msra.mxu0 0.0
        %761 = vmatprep.subr.mxu0 0.0
        %762 = vmatpush1.xpose.msra.mxu0 0.0
        %763 = vmatprep.subr.mxu0 0.0
        %764 = vmatpush1.xpose.msra.mxu0 0.0
        %765 = vmatprep.subr.mxu0 0.0
        %766 = vmatpush1.xpose.msra.mxu0 0.0
        %767 = vmatprep.subr.mxu0 0.0
        %768 = vmatpush1.xpose.msra.mxu0 0.0
        %769 = vmatprep.subr.mxu0 0.0
        %770 = vmatpush1.xpose.msra.mxu0 0.0
        %771 = vmatprep.subr.mxu0 0.0
        %772 = vmatpush1.xpose.msra.mxu0 0.0
        %773 = vmatprep.subr.mxu0 0.0
        %774 = vmatpush1.xpose.msra.mxu0 0.0
        %775 = vmatprep.subr.mxu0 0.0
        %776 = vmatpush1.xpose.msra.mxu0 0.0
        %777 = vmatprep.subr.mxu0 0.0
        %778 = vmatpush1.xpose.msra.mxu0 0.0
        %779 = vmatprep.subr.mxu0 0.0
        %780 = vmatpush1.xpose.msra.mxu0 0.0
        %781 = vmatprep.subr.mxu0 0.0
        %782 = vmatpush1.xpose.msra.mxu0 0.0
        %783 = vmatprep.subr.mxu0 0.0
        %784 = vmatpush1.xpose.msra.mxu0 0.0
        %785 = vmatprep.subr.mxu0 0.0
        %786 = vmatpush1.xpose.msra.mxu0 0.0
        %787 = vmatprep.subr.mxu0 0.0
        %788 = vmatpush1.xpose.msra.mxu0 0.0
        %789 = vmatprep.subr.mxu0 0.0
        %790 = vmatpush1.xpose.msra.mxu0 0.0
        %791 = vmatprep.subr.mxu0 0.0
        %792 = vmatpush1.xpose.msra.mxu0 0.0
        %793 = vmatprep.subr.mxu0 0.0
        %794 = vmatpush1.xpose.msra.mxu0 0.0
        %795 = vmatprep.subr.mxu0 0.0
        %796 = vmatpush1.xpose.msra.mxu0 0.0
        %797 = vmatprep.subr.mxu0 0.0
        %798 = vmatpush1.xpose.msra.mxu0 0.0
        %799 = vmatprep.subr.mxu0 0.0
        %800 = vmatpush1.xpose.msra.mxu0 0.0
        %801 = vmatprep.subr.mxu0 0.0
        %802 = vmatpush1.xpose.msra.mxu0 0.0
        %803 = vmatprep.subr.mxu0 0.0
        %804 = vmatpush1.xpose.msra.mxu0 0.0
        %805 = vmatprep.subr.mxu0 0.0
        %806 = vmatpush1.xpose.msra.mxu0 0.0
        %807 = vmatprep.subr.mxu0 0.0
        %808 = vmatpush1.xpose.msra.mxu0 0.0
        %809 = vmatprep.subr.mxu0 0.0
        %810 = vmatpush1.xpose.msra.mxu0 0.0
        %811 = vmatprep.mubr.f32.mxu0 0.0
        %812 = vmatmul.mubr.f32.gmra.mrb[0].mxu0 %v742
        %v813 = vpop.f32.mrb[0].mxu0
        %v814 = vadd.f32 0.0, %v813
        %v815 = vpop.f32.mrb[0].mxu0
        %816 = vdwg.mxu0
        %v817 = vsel %vm739, %v814, -inf
        %vm818 = vcmask 64512
        %v819 = vsel %vm818, %v817, -inf
        %820 = vmax.xlane.f32.xlu0 %v819
        %v821 = vpop.xlane.xlu0 %820
        %v822 = vsub.f32 %v817, %v821
        %v823 = vmul.f32 %v822, 1.442695
        %v824 = vpow.pop %v823
        %v825 = vsel %vm818, %v824, 0.0
        %826 = vadd.xlane.f32.xlu0 %v825
        %v827 = vpop.xlane.xlu0 %826
        %v828 = vrcp.pop %v827
        %v829 = vmul.f32 %v827, %v828
        %v830 = vsub.f32 2.0, %v829
        %v831 = vmul.f32 %v828, %v830
        %v833 = vsel %vm818, %v824, 0
        %835 = vmatprep.subr.mxu0 0.0
        %836 = vmatpush1.msra.mxu0 %v732
        %837 = vmatprep.subr.mxu0 0.0
        %838 = vmatpush1.msra.mxu0 0.0
        %839 = vmatprep.subr.mxu0 0.0
        %840 = vmatpush1.msra.mxu0 0.0
        %841 = vmatprep.subr.mxu0 0.0
        %842 = vmatpush1.msra.mxu0 0.0
        %843 = vmatprep.subr.mxu0 0.0
        %844 = vmatpush1.msra.mxu0 0.0
        %845 = vmatprep.subr.mxu0 0.0
        %846 = vmatpush1.msra.mxu0 0.0
        %847 = vmatprep.subr.mxu0 0.0
        %848 = vmatpush1.msra.mxu0 0.0
        %849 = vmatprep.subr.mxu0 0.0
        %850 = vmatpush1.msra.mxu0 0.0
        %851 = vmatprep.subr.mxu0 0.0
        %852 = vmatpush1.msra.mxu0 0.0
        %853 = vmatprep.subr.mxu0 0.0
        %854 = vmatpush1.msra.mxu0 0.0
        %855 = vmatprep.subr.mxu0 0.0
        %856 = vmatpush1.msra.mxu0 0.0
        %857 = vmatprep.subr.mxu0 0.0
        %858 = vmatpush1.msra.mxu0 0.0
        %859 = vmatprep.subr.mxu0 0.0
        %860 = vmatpush1.msra.mxu0 0.0
        %861 = vmatprep.subr.mxu0 0.0
        %862 = vmatpush1.msra.mxu0 0.0
        %863 = vmatprep.subr.mxu0 0.0
        %864 = vmatpush1.msra.mxu0 0.0
        %865 = vmatprep.subr.mxu0 0.0
        %866 = vmatpush1.msra.mxu0 0.0
        %867 = vmatprep.subr.mxu0 0.0
        %868 = vmatpush1.msra.mxu0 0.0
        %869 = vmatprep.subr.mxu0 0.0
        %870 = vmatpush1.msra.mxu0 0.0
        %871 = vmatprep.subr.mxu0 0.0
        %872 = vmatpush1.msra.mxu0 0.0
        %873 = vmatprep.subr.mxu0 0.0
        %874 = vmatpush1.msra.mxu0 0.0
        %875 = vmatprep.subr.mxu0 0.0
        %876 = vmatpush1.msra.mxu0 0.0
        %877 = vmatprep.subr.mxu0 0.0
        %878 = vmatpush1.msra.mxu0 0.0
        %879 = vmatprep.subr.mxu0 0.0
        %880 = vmatpush1.msra.mxu0 0.0
        %881 = vmatprep.subr.mxu0 0.0
        %882 = vmatpush1.msra.mxu0 0.0
        %883 = vmatprep.subr.mxu0 0.0
        %884 = vmatpush1.msra.mxu0 0.0
        %885 = vmatprep.subr.mxu0 0.0
        %886 = vmatpush1.msra.mxu0 0.0
        %887 = vmatprep.subr.mxu0 0.0
        %888 = vmatpush1.msra.mxu0 0.0
        %889 = vmatprep.subr.mxu0 0.0
        %890 = vmatpush1.msra.mxu0 0.0
        %891 = vmatprep.subr.mxu0 0.0
        %892 = vmatpush1.msra.mxu0 0.0
        %893 = vmatprep.subr.mxu0 0.0
        %894 = vmatpush1.msra.mxu0 0.0
        %895 = vmatprep.subr.mxu0 0.0
        %896 = vmatpush1.msra.mxu0 0.0
        %897 = vmatprep.subr.mxu0 0.0
        %898 = vmatpush1.msra.mxu0 0.0
        %899 = vmatprep.mubr.f32.mxu0 0.0
        %900 = vmatmul.mubr.f32.gmra.mrb[0].mxu0 %v833
        %v901 = vpop.f32.mrb[0].mxu0
        %v902 = vadd.f32 0.0, %v901
        %v903 = vpop.f32.mrb[0].mxu0
        %904 = vdwg.mxu0
        %v905 = vmul.f32 %v902, %v831
        %906 = vrot.lane.b32.xlu0 %v730, 96
        %v907 = vpop.permute.xlu0 %906
        %908 = vrot.lane.b32.xlu0 %v731, 96
        %v909 = vpop.permute.xlu0 %908
        %v910 = vsel %vm740, %v907, 0
        %v912 = vsel %vm740, %v909, 0
        %914 = vmatprep.subr.mxu0 0.0
        %915 = vmatpush1.xpose.msra.mxu0 %v912
        %916 = vmatprep.subr.mxu0 0.0
        %917 = vmatpush1.xpose.msra.mxu0 0.0
        %918 = vmatprep.subr.mxu0 0.0
        %919 = vmatpush1.xpose.msra.mxu0 0.0
        %920 = vmatprep.subr.mxu0 0.0
        %921 = vmatpush1.xpose.msra.mxu0 0.0
        %922 = vmatprep.subr.mxu0 0.0
        %923 = vmatpush1.xpose.msra.mxu0 0.0
        %924 = vmatprep.subr.mxu0 0.0
        %925 = vmatpush1.xpose.msra.mxu0 0.0
        %926 = vmatprep.subr.mxu0 0.0
        %927 = vmatpush1.xpose.msra.mxu0 0.0
        %928 = vmatprep.subr.mxu0 0.0
        %929 = vmatpush1.xpose.msra.mxu0 0.0
        %930 = vmatprep.subr.mxu0 0.0
        %931 = vmatpush1.xpose.msra.mxu0 0.0
        %932 = vmatprep.subr.mxu0 0.0
        %933 = vmatpush1.xpose.msra.mxu0 0.0
        %934 = vmatprep.subr.mxu0 0.0
        %935 = vmatpush1.xpose.msra.mxu0 0.0
        %936 = vmatprep.subr.mxu0 0.0
        %937 = vmatpush1.xpose.msra.mxu0 0.0
        %938 = vmatprep.subr.mxu0 0.0
        %939 = vmatpush1.xpose.msra.mxu0 0.0
        %940 = vmatprep.subr.mxu0 0.0
        %941 = vmatpush1.xpose.msra.mxu0 0.0
        %942 = vmatprep.subr.mxu0 0.0
        %943 = vmatpush1.xpose.msra.mxu0 0.0
        %944 = vmatprep.subr.mxu0 0.0
        %945 = vmatpush1.xpose.msra.mxu0 0.0
        %946 = vmatprep.subr.mxu0 0.0
        %947 = vmatpush1.xpose.msra.mxu0 0.0
        %948 = vmatprep.subr.mxu0 0.0
        %949 = vmatpush1.xpose.msra.mxu0 0.0
        %950 = vmatprep.subr.mxu0 0.0
        %951 = vmatpush1.xpose.msra.mxu0 0.0
        %952 = vmatprep.subr.mxu0 0.0
        %953 = vmatpush1.xpose.msra.mxu0 0.0
        %954 = vmatprep.subr.mxu0 0.0
        %955 = vmatpush1.xpose.msra.mxu0 0.0
        %956 = vmatprep.subr.mxu0 0.0
        %957 = vmatpush1.xpose.msra.mxu0 0.0
        %958 = vmatprep.subr.mxu0 0.0
        %959 = vmatpush1.xpose.msra.mxu0 0.0
        %960 = vmatprep.subr.mxu0 0.0
        %961 = vmatpush1.xpose.msra.mxu0 0.0
        %962 = vmatprep.subr.mxu0 0.0
        %963 = vmatpush1.xpose.msra.mxu0 0.0
        %964 = vmatprep.subr.mxu0 0.0
        %965 = vmatpush1.xpose.msra.mxu0 0.0
        %966 = vmatprep.subr.mxu0 0.0
        %967 = vmatpush1.xpose.msra.mxu0 0.0
        %968 = vmatprep.subr.mxu0 0.0
        %969 = vmatpush1.xpose.msra.mxu0 0.0
        %970 = vmatprep.subr.mxu0 0.0
        %971 = vmatpush1.xpose.msra.mxu0 0.0
        %972 = vmatprep.subr.mxu0 0.0
        %973 = vmatpush1.xpose.msra.mxu0 0.0
        %974 = vmatprep.subr.mxu0 0.0
        %975 = vmatpush1.xpose.msra.mxu0 0.0
        %976 = vmatprep.subr.mxu0 0.0
        %977 = vmatpush1.xpose.msra.mxu0 0.0
        %978 = vmatprep.mubr.f32.mxu0 0.0
        %979 = vmatmul.mubr.f32.gmra.mrb[0].mxu0 %v910
        %v980 = vpop.f32.mrb[0].mxu0
        %v981 = vadd.f32 0.0, %v980
        %v982 = vpop.f32.mrb[0].mxu0
        %983 = vdwg.mxu0
        %v984 = vsel %vm739, %v981, -inf
        %v985 = vsel %vm818, %v984, -inf
        %986 = vmax.xlane.f32.xlu0 %v985
        %v987 = vpop.xlane.xlu0 %986
        %v988 = vsub.f32 %v984, %v987
        %v989 = vmul.f32 %v988, 1.442695
        %v990 = vpow.pop %v989
        %v991 = vsel %vm818, %v990, 0.0
        %992 = vadd.xlane.f32.xlu0 %v991
        %v993 = vpop.xlane.xlu0 %992
        %v994 = vrcp.pop %v993
        %v995 = vmul.f32 %v993, %v994
        %v996 = vsub.f32 2.0, %v995
        %v997 = vmul.f32 %v994, %v996
        %999 = vrot.lane.b32.xlu0 %v732, 96
        %v1000 = vpop.permute.xlu0 %999
        %v1003 = vsel %vm818, %v990, 0
        %1005 = vmatprep.subr.mxu0 0.0
        %1006 = vmatpush1.msra.mxu0 %v1000
        %1007 = vmatprep.subr.mxu0 0.0
        %1008 = vmatpush1.msra.mxu0 0.0
        %1009 = vmatprep.subr.mxu0 0.0
        %1010 = vmatpush1.msra.mxu0 0.0
        %1011 = vmatprep.subr.mxu0 0.0
        %1012 = vmatpush1.msra.mxu0 0.0
        %1013 = vmatprep.subr.mxu0 0.0
        %1014 = vmatpush1.msra.mxu0 0.0
        %1015 = vmatprep.subr.mxu0 0.0
        %1016 = vmatpush1.msra.mxu0 0.0
        %1017 = vmatprep.subr.mxu0 0.0
        %1018 = vmatpush1.msra.mxu0 0.0
        %1019 = vmatprep.subr.mxu0 0.0
        %1020 = vmatpush1.msra.mxu0 0.0
        %1021 = vmatprep.subr.mxu0 0.0
        %1022 = vmatpush1.msra.mxu0 0.0
        %1023 = vmatprep.subr.mxu0 0.0
        %1024 = vmatpush1.msra.mxu0 0.0
        %1025 = vmatprep.subr.mxu0 0.0
        %1026 = vmatpush1.msra.mxu0 0.0
        %1027 = vmatprep.subr.mxu0 0.0
        %1028 = vmatpush1.msra.mxu0 0.0
        %1029 = vmatprep.subr.mxu0 0.0
        %1030 = vmatpush1.msra.mxu0 0.0
        %1031 = vmatprep.subr.mxu0 0.0
        %1032 = vmatpush1.msra.mxu0 0.0
        %1033 = vmatprep.subr.mxu0 0.0
        %1034 = vmatpush1.msra.mxu0 0.0
        %1035 = vmatprep.subr.mxu0 0.0
        %1036 = vmatpush1.msra.mxu0 0.0
        %1037 = vmatprep.subr.mxu0 0.0
        %1038 = vmatpush1.msra.mxu0 0.0
        %1039 = vmatprep.subr.mxu0 0.0
        %1040 = vmatpush1.msra.mxu0 0.0
        %1041 = vmatprep.subr.mxu0 0.0
        %1042 = vmatpush1.msra.mxu0 0.0
        %1043 = vmatprep.subr.mxu0 0.0
        %1044 = vmatpush1.msra.mxu0 0.0
        %1045 = vmatprep.subr.mxu0 0.0
        %1046 = vmatpush1.msra.mxu0 0.0
        %1047 = vmatprep.subr.mxu0 0.0
        %1048 = vmatpush1.msra.mxu0 0.0
        %1049 = vmatprep.subr.mxu0 0.0
        %1050 = vmatpush1.msra.mxu0 0.0
        %1051 = vmatprep.subr.mxu0 0.0
        %1052 = vmatpush1.msra.mxu0 0.0
        %1053 = vmatprep.subr.mxu0 0.0
        %1054 = vmatpush1.msra.mxu0 0.0
        %1055 = vmatprep.subr.mxu0 0.0
        %1056 = vmatpush1.msra.mxu0 0.0
        %1057 = vmatprep.subr.mxu0 0.0
        %1058 = vmatpush1.msra.mxu0 0.0
        %1059 = vmatprep.subr.mxu0 0.0
        %1060 = vmatpush1.msra.mxu0 0.0
        %1061 = vmatprep.subr.mxu0 0.0
        %1062 = vmatpush1.msra.mxu0 0.0
        %1063 = vmatprep.subr.mxu0 0.0
        %1064 = vmatpush1.msra.mxu0 0.0
        %1065 = vmatprep.subr.mxu0 0.0
        %1066 = vmatpush1.msra.mxu0 0.0
        %1067 = vmatprep.subr.mxu0 0.0
        %1068 = vmatpush1.msra.mxu0 0.0
        %1069 = vmatprep.mubr.f32.mxu0 0.0
        %1070 = vmatmul.mubr.f32.gmra.mrb[0].mxu0 %v1003
        %v1071 = vpop.f32.mrb[0].mxu0
        %v1072 = vadd.f32 0.0, %v1071
        %v1073 = vpop.f32.mrb[0].mxu0
        %1074 = vdwg.mxu0
        %v1075 = vmul.f32 %v1072, %v997
        %1076 = vrot.lane.b32.xlu0 %v730, 64
        %v1077 = vpop.permute.xlu0 %1076
        %1078 = vrot.lane.b32.xlu0 %v731, 64
        %v1079 = vpop.permute.xlu0 %1078
        %v1080 = vsel %vm740, %v1077, 0
        %v1082 = vsel %vm740, %v1079, 0
        %1084 = vmatprep.subr.mxu0 0.0
        %1085 = vmatpush1.xpose.msra.mxu0 %v1082
        %1086 = vmatprep.subr.mxu0 0.0
        %1087 = vmatpush1.xpose.msra.mxu0 0.0
        %1088 = vmatprep.subr.mxu0 0.0
        %1089 = vmatpush1.xpose.msra.mxu0 0.0
        %1090 = vmatprep.subr.mxu0 0.0
        %1091 = vmatpush1.xpose.msra.mxu0 0.0
        %1092 = vmatprep.subr.mxu0 0.0
        %1093 = vmatpush1.xpose.msra.mxu0 0.0
        %1094 = vmatprep.subr.mxu0 0.0
        %1095 = vmatpush1.xpose.msra.mxu0 0.0
        %1096 = vmatprep.subr.mxu0 0.0
        %1097 = vmatpush1.xpose.msra.mxu0 0.0
        %1098 = vmatprep.subr.mxu0 0.0
        %1099 = vmatpush1.xpose.msra.mxu0 0.0
        %1100 = vmatprep.subr.mxu0 0.0
        %1101 = vmatpush1.xpose.msra.mxu0 0.0
        %1102 = vmatprep.subr.mxu0 0.0
        %1103 = vmatpush1.xpose.msra.mxu0 0.0
        %1104 = vmatprep.subr.mxu0 0.0
        %1105 = vmatpush1.xpose.msra.mxu0 0.0
        %1106 = vmatprep.subr.mxu0 0.0
        %1107 = vmatpush1.xpose.msra.mxu0 0.0
        %1108 = vmatprep.subr.mxu0 0.0
        %1109 = vmatpush1.xpose.msra.mxu0 0.0
        %1110 = vmatprep.subr.mxu0 0.0
        %1111 = vmatpush1.xpose.msra.mxu0 0.0
        %1112 = vmatprep.subr.mxu0 0.0
        %1113 = vmatpush1.xpose.msra.mxu0 0.0
        %1114 = vmatprep.subr.mxu0 0.0
        %1115 = vmatpush1.xpose.msra.mxu0 0.0
        %1116 = vmatprep.subr.mxu0 0.0
        %1117 = vmatpush1.xpose.msra.mxu0 0.0
        %1118 = vmatprep.subr.mxu0 0.0
        %1119 = vmatpush1.xpose.msra.mxu0 0.0
        %1120 = vmatprep.subr.mxu0 0.0
        %1121 = vmatpush1.xpose.msra.mxu0 0.0
        %1122 = vmatprep.subr.mxu0 0.0
        %1123 = vmatpush1.xpose.msra.mxu0 0.0
        %1124 = vmatprep.subr.mxu0 0.0
        %1125 = vmatpush1.xpose.msra.mxu0 0.0
        %1126 = vmatprep.subr.mxu0 0.0
        %1127 = vmatpush1.xpose.msra.mxu0 0.0
        %1128 = vmatprep.subr.mxu0 0.0
        %1129 = vmatpush1.xpose.msra.mxu0 0.0
        %1130 = vmatprep.subr.mxu0 0.0
        %1131 = vmatpush1.xpose.msra.mxu0 0.0
        %1132 = vmatprep.subr.mxu0 0.0
        %1133 = vmatpush1.xpose.msra.mxu0 0.0
        %1134 = vmatprep.subr.mxu0 0.0
        %1135 = vmatpush1.xpose.msra.mxu0 0.0
        %1136 = vmatprep.subr.mxu0 0.0
        %1137 = vmatpush1.xpose.msra.mxu0 0.0
        %1138 = vmatprep.subr.mxu0 0.0
        %1139 = vmatpush1.xpose.msra.mxu0 0.0
        %1140 = vmatprep.subr.mxu0 0.0
        %1141 = vmatpush1.xpose.msra.mxu0 0.0
        %1142 = vmatprep.subr.mxu0 0.0
        %1143 = vmatpush1.xpose.msra.mxu0 0.0
        %1144 = vmatprep.subr.mxu0 0.0
        %1145 = vmatpush1.xpose.msra.mxu0 0.0
        %1146 = vmatprep.subr.mxu0 0.0
        %1147 = vmatpush1.xpose.msra.mxu0 0.0
        %1148 = vmatprep.mubr.f32.mxu0 0.0
        %1149 = vmatmul.mubr.f32.gmra.mrb[0].mxu0 %v1080
        %v1150 = vpop.f32.mrb[0].mxu0
        %v1151 = vadd.f32 0.0, %v1150
        %v1152 = vpop.f32.mrb[0].mxu0
        %1153 = vdwg.mxu0
        %v1154 = vsel %vm739, %v1151, -inf
        %v1155 = vsel %vm818, %v1154, -inf
        %1156 = vmax.xlane.f32.xlu0 %v1155
        %v1157 = vpop.xlane.xlu0 %1156
        %v1158 = vsub.f32 %v1154, %v1157
        %v1159 = vmul.f32 %v1158, 1.442695
        %v1160 = vpow.pop %v1159
        %v1161 = vsel %vm818, %v1160, 0.0
        %1162 = vadd.xlane.f32.xlu0 %v1161
        %v1163 = vpop.xlane.xlu0 %1162
        %v1164 = vrcp.pop %v1163
        %v1165 = vmul.f32 %v1163, %v1164
        %v1166 = vsub.f32 2.0, %v1165
        %v1167 = vmul.f32 %v1164, %v1166
        %1168 = vrot.lane.b32.xlu0 %v732, 64
        %v1169 = vpop.permute.xlu0 %1168
        %v1172 = vsel %vm818, %v1160, 0
        %1174 = vmatprep.subr.mxu0 0.0
        %1175 = vmatpush1.msra.mxu0 %v1169
        %1176 = vmatprep.subr.mxu0 0.0
        %1177 = vmatpush1.msra.mxu0 0.0
        %1178 = vmatprep.subr.mxu0 0.0
        %1179 = vmatpush1.msra.mxu0 0.0
        %1180 = vmatprep.subr.mxu0 0.0
        %1181 = vmatpush1.msra.mxu0 0.0
        %1182 = vmatprep.subr.mxu0 0.0
        %1183 = vmatpush1.msra.mxu0 0.0
        %1184 = vmatprep.subr.mxu0 0.0
        %1185 = vmatpush1.msra.mxu0 0.0
        %1186 = vmatprep.subr.mxu0 0.0
        %1187 = vmatpush1.msra.mxu0 0.0
        %1188 = vmatprep.subr.mxu0 0.0
        %1189 = vmatpush1.msra.mxu0 0.0
        %1190 = vmatprep.subr.mxu0 0.0
        %1191 = vmatpush1.msra.mxu0 0.0
        %1192 = vmatprep.subr.mxu0 0.0
        %1193 = vmatpush1.msra.mxu0 0.0
        %1194 = vmatprep.subr.mxu0 0.0
        %1195 = vmatpush1.msra.mxu0 0.0
        %1196 = vmatprep.subr.mxu0 0.0
        %1197 = vmatpush1.msra.mxu0 0.0
        %1198 = vmatprep.subr.mxu0 0.0
        %1199 = vmatpush1.msra.mxu0 0.0
        %1200 = vmatprep.subr.mxu0 0.0
        %1201 = vmatpush1.msra.mxu0 0.0
        %1202 = vmatprep.subr.mxu0 0.0
        %1203 = vmatpush1.msra.mxu0 0.0
        %1204 = vmatprep.subr.mxu0 0.0
        %1205 = vmatpush1.msra.mxu0 0.0
        %1206 = vmatprep.subr.mxu0 0.0
        %1207 = vmatpush1.msra.mxu0 0.0
        %1208 = vmatprep.subr.mxu0 0.0
        %1209 = vmatpush1.msra.mxu0 0.0
        %1210 = vmatprep.subr.mxu0 0.0
        %1211 = vmatpush1.msra.mxu0 0.0
        %1212 = vmatprep.subr.mxu0 0.0
        %1213 = vmatpush1.msra.mxu0 0.0
        %1214 = vmatprep.subr.mxu0 0.0
        %1215 = vmatpush1.msra.mxu0 0.0
        %1216 = vmatprep.subr.mxu0 0.0
        %1217 = vmatpush1.msra.mxu0 0.0
        %1218 = vmatprep.subr.mxu0 0.0
        %1219 = vmatpush1.msra.mxu0 0.0
        %1220 = vmatprep.subr.mxu0 0.0
        %1221 = vmatpush1.msra.mxu0 0.0
        %1222 = vmatprep.subr.mxu0 0.0
        %1223 = vmatpush1.msra.mxu0 0.0
        %1224 = vmatprep.subr.mxu0 0.0
        %1225 = vmatpush1.msra.mxu0 0.0
        %1226 = vmatprep.subr.mxu0 0.0
        %1227 = vmatpush1.msra.mxu0 0.0
        %1228 = vmatprep.subr.mxu0 0.0
        %1229 = vmatpush1.msra.mxu0 0.0
        %1230 = vmatprep.subr.mxu0 0.0
        %1231 = vmatpush1.msra.mxu0 0.0
        %1232 = vmatprep.subr.mxu0 0.0
        %1233 = vmatpush1.msra.mxu0 0.0
        %1234 = vmatprep.subr.mxu0 0.0
        %1235 = vmatpush1.msra.mxu0 0.0
        %1236 = vmatprep.subr.mxu0 0.0
        %1237 = vmatpush1.msra.mxu0 0.0
        %1238 = vmatprep.mubr.f32.mxu0 0.0
        %1239 = vmatmul.mubr.f32.gmra.mrb[0].mxu0 %v1172
        %v1240 = vpop.f32.mrb[0].mxu0
        %v1241 = vadd.f32 0.0, %v1240
        %v1242 = vpop.f32.mrb[0].mxu0
        %1243 = vdwg.mxu0
        %v1244 = vmul.f32 %v1241, %v1167
        %1245 = vrot.lane.b32.xlu0 %v730, 32
        %v1246 = vpop.permute.xlu0 %1245
        %1247 = vrot.lane.b32.xlu0 %v731, 32
        %v1248 = vpop.permute.xlu0 %1247
        %v1249 = vsel %vm740, %v1246, 0
        %v1251 = vsel %vm740, %v1248, 0
        %1253 = vmatprep.subr.mxu0 0.0
        %1254 = vmatpush1.xpose.msra.mxu0 %v1251
        %1255 = vmatprep.subr.mxu0 0.0
        %1256 = vmatpush1.xpose.msra.mxu0 0.0
        %1257 = vmatprep.subr.mxu0 0.0
        %1258 = vmatpush1.xpose.msra.mxu0 0.0
        %1259 = vmatprep.subr.mxu0 0.0
        %1260 = vmatpush1.xpose.msra.mxu0 0.0
        %1261 = vmatprep.subr.mxu0 0.0
        %1262 = vmatpush1.xpose.msra.mxu0 0.0
        %1263 = vmatprep.subr.mxu0 0.0
        %1264 = vmatpush1.xpose.msra.mxu0 0.0
        %1265 = vmatprep.subr.mxu0 0.0
        %1266 = vmatpush1.xpose.msra.mxu0 0.0
        %1267 = vmatprep.subr.mxu0 0.0
        %1268 = vmatpush1.xpose.msra.mxu0 0.0
        %1269 = vmatprep.subr.mxu0 0.0
        %1270 = vmatpush1.xpose.msra.mxu0 0.0
        %1271 = vmatprep.subr.mxu0 0.0
        %1272 = vmatpush1.xpose.msra.mxu0 0.0
        %1273 = vmatprep.subr.mxu0 0.0
        %1274 = vmatpush1.xpose.msra.mxu0 0.0
        %1275 = vmatprep.subr.mxu0 0.0
        %1276 = vmatpush1.xpose.msra.mxu0 0.0
        %1277 = vmatprep.subr.mxu0 0.0
        %1278 = vmatpush1.xpose.msra.mxu0 0.0
        %1279 = vmatprep.subr.mxu0 0.0
        %1280 = vmatpush1.xpose.msra.mxu0 0.0
        %1281 = vmatprep.subr.mxu0 0.0
        %1282 = vmatpush1.xpose.msra.mxu0 0.0
        %1283 = vmatprep.subr.mxu0 0.0
        %1284 = vmatpush1.xpose.msra.mxu0 0.0
        %1285 = vmatprep.subr.mxu0 0.0
        %1286 = vmatpush1.xpose.msra.mxu0 0.0
        %1287 = vmatprep.subr.mxu0 0.0
        %1288 = vmatpush1.xpose.msra.mxu0 0.0
        %1289 = vmatprep.subr.mxu0 0.0
        %1290 = vmatpush1.xpose.msra.mxu0 0.0
        %1291 = vmatprep.subr.mxu0 0.0
        %1292 = vmatpush1.xpose.msra.mxu0 0.0
        %1293 = vmatprep.subr.mxu0 0.0
        %1294 = vmatpush1.xpose.msra.mxu0 0.0
        %1295 = vmatprep.subr.mxu0 0.0
        %1296 = vmatpush1.xpose.msra.mxu0 0.0
        %1297 = vmatprep.subr.mxu0 0.0
        %1298 = vmatpush1.xpose.msra.mxu0 0.0
        %1299 = vmatprep.subr.mxu0 0.0
        %1300 = vmatpush1.xpose.msra.mxu0 0.0
        %1301 = vmatprep.subr.mxu0 0.0
        %1302 = vmatpush1.xpose.msra.mxu0 0.0
        %1303 = vmatprep.subr.mxu0 0.0
        %1304 = vmatpush1.xpose.msra.mxu0 0.0
        %1305 = vmatprep.subr.mxu0 0.0
        %1306 = vmatpush1.xpose.msra.mxu0 0.0
        %1307 = vmatprep.subr.mxu0 0.0
        %1308 = vmatpush1.xpose.msra.mxu0 0.0
        %1309 = vmatprep.subr.mxu0 0.0
        %1310 = vmatpush1.xpose.msra.mxu0 0.0
        %1311 = vmatprep.subr.mxu0 0.0
        %1312 = vmatpush1.xpose.msra.mxu0 0.0
        %1313 = vmatprep.subr.mxu0 0.0
        %1314 = vmatpush1.xpose.msra.mxu0 0.0
        %1315 = vmatprep.subr.mxu0 0.0
        %1316 = vmatpush1.xpose.msra.mxu0 0.0
        %1317 = vmatprep.mubr.f32.mxu0 0.0
        %1318 = vmatmul.mubr.f32.gmra.mrb[0].mxu0 %v1249
        %v1319 = vpop.f32.mrb[0].mxu0
        %v1320 = vadd.f32 0.0, %v1319
        %v1321 = vpop.f32.mrb[0].mxu0
        %1322 = vdwg.mxu0
        %v1323 = vsel %vm739, %v1320, -inf
        %v1324 = vsel %vm818, %v1323, -inf
        %1325 = vmax.xlane.f32.xlu0 %v1324
        %v1326 = vpop.xlane.xlu0 %1325
        %v1327 = vsub.f32 %v1323, %v1326
        %v1328 = vmul.f32 %v1327, 1.442695
        %v1329 = vpow.pop %v1328
        %v1330 = vsel %vm818, %v1329, 0.0
        %1331 = vadd.xlane.f32.xlu0 %v1330
        %v1332 = vpop.xlane.xlu0 %1331
        %v1333 = vrcp.pop %v1332
        %v1334 = vmul.f32 %v1332, %v1333
        %v1335 = vsub.f32 2.0, %v1334
        %v1336 = vmul.f32 %v1333, %v1335
        %1337 = vrot.lane.b32.xlu0 %v732, 32
        %v1338 = vpop.permute.xlu0 %1337
        %v1341 = vsel %vm818, %v1329, 0
        %1343 = vmatprep.subr.mxu0 0.0
        %1344 = vmatpush1.msra.mxu0 %v1338
        %1345 = vmatprep.subr.mxu0 0.0
        %1346 = vmatpush1.msra.mxu0 0.0
        %1347 = vmatprep.subr.mxu0 0.0
        %1348 = vmatpush1.msra.mxu0 0.0
        %1349 = vmatprep.subr.mxu0 0.0
        %1350 = vmatpush1.msra.mxu0 0.0
        %1351 = vmatprep.subr.mxu0 0.0
        %1352 = vmatpush1.msra.mxu0 0.0
        %1353 = vmatprep.subr.mxu0 0.0
        %1354 = vmatpush1.msra.mxu0 0.0
        %1355 = vmatprep.subr.mxu0 0.0
        %1356 = vmatpush1.msra.mxu0 0.0
        %1357 = vmatprep.subr.mxu0 0.0
        %1358 = vmatpush1.msra.mxu0 0.0
        %1359 = vmatprep.subr.mxu0 0.0
        %1360 = vmatpush1.msra.mxu0 0.0
        %1361 = vmatprep.subr.mxu0 0.0
        %1362 = vmatpush1.msra.mxu0 0.0
        %1363 = vmatprep.subr.mxu0 0.0
        %1364 = vmatpush1.msra.mxu0 0.0
        %1365 = vmatprep.subr.mxu0 0.0
        %1366 = vmatpush1.msra.mxu0 0.0
        %1367 = vmatprep.subr.mxu0 0.0
        %1368 = vmatpush1.msra.mxu0 0.0
        %1369 = vmatprep.subr.mxu0 0.0
        %1370 = vmatpush1.msra.mxu0 0.0
        %1371 = vmatprep.subr.mxu0 0.0
        %1372 = vmatpush1.msra.mxu0 0.0
        %1373 = vmatprep.subr.mxu0 0.0
        %1374 = vmatpush1.msra.mxu0 0.0
        %1375 = vmatprep.subr.mxu0 0.0
        %1376 = vmatpush1.msra.mxu0 0.0
        %1377 = vmatprep.subr.mxu0 0.0
        %1378 = vmatpush1.msra.mxu0 0.0
        %1379 = vmatprep.subr.mxu0 0.0
        %1380 = vmatpush1.msra.mxu0 0.0
        %1381 = vmatprep.subr.mxu0 0.0
        %1382 = vmatpush1.msra.mxu0 0.0
        %1383 = vmatprep.subr.mxu0 0.0
        %1384 = vmatpush1.msra.mxu0 0.0
        %1385 = vmatprep.subr.mxu0 0.0
        %1386 = vmatpush1.msra.mxu0 0.0
        %1387 = vmatprep.subr.mxu0 0.0
        %1388 = vmatpush1.msra.mxu0 0.0
        %1389 = vmatprep.subr.mxu0 0.0
        %1390 = vmatpush1.msra.mxu0 0.0
        %1391 = vmatprep.subr.mxu0 0.0
        %1392 = vmatpush1.msra.mxu0 0.0
        %1393 = vmatprep.subr.mxu0 0.0
        %1394 = vmatpush1.msra.mxu0 0.0
        %1395 = vmatprep.subr.mxu0 0.0
        %1396 = vmatpush1.msra.mxu0 0.0
        %1397 = vmatprep.subr.mxu0 0.0
        %1398 = vmatpush1.msra.mxu0 0.0
        %1399 = vmatprep.subr.mxu0 0.0
        %1400 = vmatpush1.msra.mxu0 0.0
        %1401 = vmatprep.subr.mxu0 0.0
        %1402 = vmatpush1.msra.mxu0 0.0
        %1403 = vmatprep.subr.mxu0 0.0
        %1404 = vmatpush1.msra.mxu0 0.0
        %1405 = vmatprep.subr.mxu0 0.0
        %1406 = vmatpush1.msra.mxu0 0.0
        %1407 = vmatprep.mubr.f32.mxu0 0.0
        %1408 = vmatmul.mubr.f32.gmra.mrb[0].mxu0 %v1341
        %v1409 = vpop.f32.mrb[0].mxu0
        %v1410 = vadd.f32 0.0, %v1409
        %v1411 = vpop.f32.mrb[0].mxu0
        %1412 = vdwg.mxu0
        %v1413 = vmul.f32 %v1410, %v1336
        %1415 = vrot.lane.b32.xlu0 %v1075, 32
        %v1416 = vpop.permute.xlu0 %1415
        %1419 = vrot.lane.b32.xlu0 %v1244, 64
        %v1420 = vpop.permute.xlu0 %1419
        %1423 = vrot.lane.b32.xlu0 %v1413, 96
        %v1424 = vpop.permute.xlu0 %1423
        %v1426 = vsel %vm740, %v905, %v1416
        %vm1427 = vcmask 523264
        %v1428 = vsel %vm1427, %v1426, %v1420
        %vm1429 = vcmask 785408
        %v1430 = vsel %vm1429, %v1428, %v1424
        %v1431 = vld [vmem:[#allocation10] sm:$0xff]
        %v1432 = vld [vmem:[#allocation10 + $0x8] sm:$0xff]
        %v1433 = vld [vmem:[#allocation10 + $0x10] sm:$0xff]
        %v1434 = vld [vmem:[#allocation10 + $0x18] sm:$0xff]
        %v1435 = vld [vmem:[#allocation10 + $0x20] sm:$0xff]
        %v1436 = vld [vmem:[#allocation10 + $0x28] sm:$0xff]
        %v1437 = vld [vmem:[#allocation10 + $0x30] sm:$0xff]
        %v1438 = vld [vmem:[#allocation10 + $0x38] sm:$0xff]
        %v1439 = vld [vmem:[#allocation10 + $0x40] sm:$0xff]
        %v1440 = vld [vmem:[#allocation10 + $0x48] sm:$0xff]
        %v1441 = vld [vmem:[#allocation10 + $0x50] sm:$0xff]
        %v1442 = vld [vmem:[#allocation10 + $0x58] sm:$0xff]
        %v1443 = vld [vmem:[#allocation10 + $0x60] sm:$0xff]
        %v1444 = vld [vmem:[#allocation10 + $0x68] sm:$0xff]
        %v1445 = vld [vmem:[#allocation10 + $0x70] sm:$0xff]
        %v1446 = vld [vmem:[#allocation10 + $0x78] sm:$0xff]
        %v1447 = vld [vmem:[%s5] sm:$0x1]
        %v1449 = vlaneseq
        %v1450 = vshrl.u32 %v1449, 7
        %v1451 = vsub.s32 0, %v1450
        %v1452 = vrot.slane %v1447, %v1451
        %1454 = vmatprep.subr.mxu0 0.0
        %1455 = vmatpush1.msra.mxu0 %v1431
        %1456 = vmatprep.subr.mxu0 0.0
        %1457 = vmatpush1.msra.mxu0 %v1432
        %1458 = vmatprep.subr.mxu0 0.0
        %1459 = vmatpush1.msra.mxu0 %v1433
        %1460 = vmatprep.subr.mxu0 0.0
        %1461 = vmatpush1.msra.mxu0 %v1434
        %1462 = vmatprep.subr.mxu0 0.0
        %1463 = vmatpush1.msra.mxu0 %v1435
        %1464 = vmatprep.subr.mxu0 0.0
        %1465 = vmatpush1.msra.mxu0 %v1436
        %1466 = vmatprep.subr.mxu0 0.0
        %1467 = vmatpush1.msra.mxu0 %v1437
        %1468 = vmatprep.subr.mxu0 0.0
        %1469 = vmatpush1.msra.mxu0 %v1438
        %1470 = vmatprep.subr.mxu0 0.0
        %1471 = vmatpush1.msra.mxu0 %v1439
        %1472 = vmatprep.subr.mxu0 0.0
        %1473 = vmatpush1.msra.mxu0 %v1440
        %1474 = vmatprep.subr.mxu0 0.0
        %1475 = vmatpush1.msra.mxu0 %v1441
        %1476 = vmatprep.subr.mxu0 0.0
        %1477 = vmatpush1.msra.mxu0 %v1442
        %1478 = vmatprep.subr.mxu0 0.0
        %1479 = vmatpush1.msra.mxu0 %v1443
        %1480 = vmatprep.subr.mxu0 0.0
        %1481 = vmatpush1.msra.mxu0 %v1444
        %1482 = vmatprep.subr.mxu0 0.0
        %1483 = vmatpush1.msra.mxu0 %v1445
        %1484 = vmatprep.subr.mxu0 0.0
        %1485 = vmatpush1.msra.mxu0 %v1446
        %1486 = vmatprep.subr.mxu0 0.0
        %1487 = vmatpush1.msra.mxu0 0.0
        %1488 = vmatprep.subr.mxu0 0.0
        %1489 = vmatpush1.msra.mxu0 0.0
        %1490 = vmatprep.subr.mxu0 0.0
        %1491 = vmatpush1.msra.mxu0 0.0
        %1492 = vmatprep.subr.mxu0 0.0
        %1493 = vmatpush1.msra.mxu0 0.0
        %1494 = vmatprep.subr.mxu0 0.0
        %1495 = vmatpush1.msra.mxu0 0.0
        %1496 = vmatprep.subr.mxu0 0.0
        %1497 = vmatpush1.msra.mxu0 0.0
        %1498 = vmatprep.subr.mxu0 0.0
        %1499 = vmatpush1.msra.mxu0 0.0
        %1500 = vmatprep.subr.mxu0 0.0
        %1501 = vmatpush1.msra.mxu0 0.0
        %1502 = vmatprep.subr.mxu0 0.0
        %1503 = vmatpush1.msra.mxu0 0.0
        %1504 = vmatprep.subr.mxu0 0.0
        %1505 = vmatpush1.msra.mxu0 0.0
        %1506 = vmatprep.subr.mxu0 0.0
        %1507 = vmatpush1.msra.mxu0 0.0
        %1508 = vmatprep.subr.mxu0 0.0
        %1509 = vmatpush1.msra.mxu0 0.0
        %1510 = vmatprep.subr.mxu0 0.0
        %1511 = vmatpush1.msra.mxu0 0.0
        %1512 = vmatprep.subr.mxu0 0.0
        %1513 = vmatpush1.msra.mxu0 0.0
        %1514 = vmatprep.subr.mxu0 0.0
        %1515 = vmatpush1.msra.mxu0 0.0
        %1516 = vmatprep.subr.mxu0 0.0
        %1517 = vmatpush1.msra.mxu0 0.0
        %1518 = vmatprep.mubr.f32.mxu0 0.0
        %1519 = vmatmul.mubr.f32.gmra.mrb[0].mxu0 %v1430
        %v1520 = vpop.f32.mrb[0].mxu0
        %v1521 = vadd.f32 %v1452, %v1520
        %v1522 = vpop.f32.mrb[0].mxu0
        %1523 = vdwg.mxu0
        %v1524 = vadd.f32 %v728, %v1521
        %1525 = vadd.xlane.f32.xlu0 %v1524
        %v1526 = vpop.xlane.xlu0 %1525
        %v1527 = vrcp.pop 128.0
        %v1528 = vmul.f32 %v1526, %v1527
        %v1529 = vsub.f32 %v1524, %v1528
        %v1530 = vmul.f32 %v1529, %v1529
        %1531 = vadd.xlane.f32.xlu0 %v1530
        %v1532 = vpop.xlane.xlu0 %1531
        %v1533 = vmul.f32 %v1532, %v1527
        %v1534 = vadd.f32 %v1533, 1e-05
        %v1535 = vrsqrt.pop %v1534
        %v1536 = vmul.f32 %v1529, %v1535
        %v1537 = vld [vmem:[%s6] sm:$0x1]
        %v1539 = vlaneseq
        %v1540 = vshrl.u32 %v1539, 7
        %v1541 = vsub.s32 0, %v1540
        %v1542 = vrot.slane %v1537, %v1541
        %v1544 = vmul.f32 %v1536, %v1542
        %v1545 = vld [vmem:[%s7] sm:$0x1]
        %v1547 = vlaneseq
        %v1548 = vshrl.u32 %v1547, 7
        %v1549 = vsub.s32 0, %v1548
        %v1550 = vrot.slane %v1545, %v1549
        %v1552 = vadd.f32 %v1544, %v1550
        %v1553 = vld [vmem:[#allocation11] sm:$0xff]
        %v1554 = vld [vmem:[#allocation11 + $0x8] sm:$0xff]
        %v1555 = vld [vmem:[#allocation11 + $0x10] sm:$0xff]
        %v1556 = vld [vmem:[#allocation11 + $0x18] sm:$0xff]
        %v1557 = vld [vmem:[#allocation11 + $0x20] sm:$0xff]
        %v1558 = vld [vmem:[#allocation11 + $0x28] sm:$0xff]
        %v1559 = vld [vmem:[#allocation11 + $0x30] sm:$0xff]
        %v1560 = vld [vmem:[#allocation11 + $0x38] sm:$0xff]
        %v1561 = vld [vmem:[#allocation11 + $0x40] sm:$0xff]
        %v1562 = vld [vmem:[#allocation11 + $0x48] sm:$0xff]
        %v1563 = vld [vmem:[#allocation11 + $0x50] sm:$0xff]
        %v1564 = vld [vmem:[#allocation11 + $0x58] sm:$0xff]
        %v1565 = vld [vmem:[#allocation11 + $0x60] sm:$0xff]
        %v1566 = vld [vmem:[#allocation11 + $0x68] sm:$0xff]
        %v1567 = vld [vmem:[#allocation11 + $0x70] sm:$0xff]
        %v1568 = vld [vmem:[#allocation11 + $0x78] sm:$0xff]
        %v1569 = vld [vmem:[#allocation11 + $0x80] sm:$0xff]
        %v1570 = vld [vmem:[#allocation11 + $0x88] sm:$0xff]
        %v1571 = vld [vmem:[#allocation11 + $0x90] sm:$0xff]
        %v1572 = vld [vmem:[#allocation11 + $0x98] sm:$0xff]
        %v1573 = vld [vmem:[#allocation11 + $0xa0] sm:$0xff]
        %v1574 = vld [vmem:[#allocation11 + $0xa8] sm:$0xff]
        %v1575 = vld [vmem:[#allocation11 + $0xb0] sm:$0xff]
        %v1576 = vld [vmem:[#allocation11 + $0xb8] sm:$0xff]
        %v1577 = vld [vmem:[#allocation11 + $0xc0] sm:$0xff]
        %v1578 = vld [vmem:[#allocation11 + $0xc8] sm:$0xff]
        %v1579 = vld [vmem:[#allocation11 + $0xd0] sm:$0xff]
        %v1580 = vld [vmem:[#allocation11 + $0xd8] sm:$0xff]
        %v1581 = vld [vmem:[#allocation11 + $0xe0] sm:$0xff]
        %v1582 = vld [vmem:[#allocation11 + $0xe8] sm:$0xff]
        %v1583 = vld [vmem:[#allocation11 + $0xf0] sm:$0xff]
        %v1584 = vld [vmem:[#allocation11 + $0xf8] sm:$0xff]
        %v1585 = vld [vmem:[#allocation11 + $0x100] sm:$0xff]
        %v1586 = vld [vmem:[#allocation11 + $0x108] sm:$0xff]
        %v1587 = vld [vmem:[#allocation11 + $0x110] sm:$0xff]
        %v1588 = vld [vmem:[#allocation11 + $0x118] sm:$0xff]
        %v1589 = vld [vmem:[#allocation11 + $0x120] sm:$0xff]
        %v1590 = vld [vmem:[#allocation11 + $0x128] sm:$0xff]
        %v1591 = vld [vmem:[#allocation11 + $0x130] sm:$0xff]
        %v1592 = vld [vmem:[#allocation11 + $0x138] sm:$0xff]
        %v1593 = vld [vmem:[#allocation11 + $0x140] sm:$0xff]
        %v1594 = vld [vmem:[#allocation11 + $0x148] sm:$0xff]
        %v1595 = vld [vmem:[#allocation11 + $0x150] sm:$0xff]
        %v1596 = vld [vmem:[#allocation11 + $0x158] sm:$0xff]
        %v1597 = vld [vmem:[#allocation11 + $0x160] sm:$0xff]
        %v1598 = vld [vmem:[#allocation11 + $0x168] sm:$0xff]
        %v1599 = vld [vmem:[#allocation11 + $0x170] sm:$0xff]
        %v1600 = vld [vmem:[#allocation11 + $0x178] sm:$0xff]
        %v1601 = vld [vmem:[#allocation11 + $0x180] sm:$0xff]
        %v1602 = vld [vmem:[#allocation11 + $0x188] sm:$0xff]
        %v1603 = vld [vmem:[#allocation11 + $0x190] sm:$0xff]
        %v1604 = vld [vmem:[#allocation11 + $0x198] sm:$0xff]
        %v1605 = vld [vmem:[#allocation11 + $0x1a0] sm:$0xff]
        %v1606 = vld [vmem:[#allocation11 + $0x1a8] sm:$0xff]
        %v1607 = vld [vmem:[#allocation11 + $0x1b0] sm:$0xff]
        %v1608 = vld [vmem:[#allocation11 + $0x1b8] sm:$0xff]
        %v1609 = vld [vmem:[#allocation11 + $0x1c0] sm:$0xff]
        %v1610 = vld [vmem:[#allocation11 + $0x1c8] sm:$0xff]
        %v1611 = vld [vmem:[#allocation11 + $0x1d0] sm:$0xff]
        %v1612 = vld [vmem:[#allocation11 + $0x1d8] sm:$0xff]
        %v1613 = vld [vmem:[#allocation11 + $0x1e0] sm:$0xff]
        %v1614 = vld [vmem:[#allocation11 + $0x1e8] sm:$0xff]
        %v1615 = vld [vmem:[#allocation11 + $0x1f0] sm:$0xff]
        %v1616 = vld [vmem:[#allocation11 + $0x1f8] sm:$0xff]
        %v1617 = vld [vmem:[%s9] sm:$0xf]
        %v1619 = vlaneseq
        %v1620 = vshrl.u32 %v1619, 7
        %v1621 = vsub.s32 0, %v1620
        %v1622 = vrot.slane %v1617, %v1621
        %v1623 = vlaneseq
        %v1624 = vshrl.u32 %v1623, 7
        %v1625 = vsub.s32 1, %v1624
        %v1626 = vrot.slane %v1617, %v1625
        %v1627 = vlaneseq
        %v1628 = vshrl.u32 %v1627, 7
        %v1629 = vsub.s32 2, %v1628
        %v1630 = vrot.slane %v1617, %v1629
        %v1631 = vlaneseq
        %v1632 = vshrl.u32 %v1631, 7
        %v1633 = vsub.s32 3, %v1632
        %v1634 = vrot.slane %v1617, %v1633
        %1639 = vmatprep.subr.mxu0 %v1554
        %1640 = vmatpush1.msra.mxu0 %v1553
        %1641 = vmatprep.subr.mxu0 %v1558
        %1642 = vmatpush1.msra.mxu0 %v1557
        %1643 = vmatprep.subr.mxu0 %v1562
        %1644 = vmatpush1.msra.mxu0 %v1561
        %1645 = vmatprep.subr.mxu0 %v1566
        %1646 = vmatpush1.msra.mxu0 %v1565
        %1647 = vmatprep.subr.mxu0 %v1570
        %1648 = vmatpush1.msra.mxu0 %v1569
        %1649 = vmatprep.subr.mxu0 %v1574
        %1650 = vmatpush1.msra.mxu0 %v1573
        %1651 = vmatprep.subr.mxu0 %v1578
        %1652 = vmatpush1.msra.mxu0 %v1577
        %1653 = vmatprep.subr.mxu0 %v1582
        %1654 = vmatpush1.msra.mxu0 %v1581
        %1655 = vmatprep.subr.mxu0 %v1586
        %1656 = vmatpush1.msra.mxu0 %v1585
        %1657 = vmatprep.subr.mxu0 %v1590
        %1658 = vmatpush1.msra.mxu0 %v1589
        %1659 = vmatprep.subr.mxu0 %v1594
        %1660 = vmatpush1.msra.mxu0 %v1593
        %1661 = vmatprep.subr.mxu0 %v1598
        %1662 = vmatpush1.msra.mxu0 %v1597
        %1663 = vmatprep.subr.mxu0 %v1602
        %1664 = vmatpush1.msra.mxu0 %v1601
        %1665 = vmatprep.subr.mxu0 %v1606
        %1666 = vmatpush1.msra.mxu0 %v1605
        %1667 = vmatprep.subr.mxu0 %v1610
        %1668 = vmatpush1.msra.mxu0 %v1609
        %1669 = vmatprep.subr.mxu0 %v1614
        %1670 = vmatpush1.msra.mxu0 %v1613
        %1671 = vmatprep.subr.mxu0 0.0
        %1672 = vmatpush1.msra.mxu0 0.0
        %1673 = vmatprep.subr.mxu0 0.0
        %1674 = vmatpush1.msra.mxu0 0.0
        %1675 = vmatprep.subr.mxu0 0.0
        %1676 = vmatpush1.msra.mxu0 0.0
        %1677 = vmatprep.subr.mxu0 0.0
        %1678 = vmatpush1.msra.mxu0 0.0
        %1679 = vmatprep.subr.mxu0 0.0
        %1680 = vmatpush1.msra.mxu0 0.0
        %1681 = vmatprep.subr.mxu0 0.0
        %1682 = vmatpush1.msra.mxu0 0.0
        %1683 = vmatprep.subr.mxu0 0.0
        %1684 = vmatpush1.msra.mxu0 0.0
        %1685 = vmatprep.subr.mxu0 0.0
        %1686 = vmatpush1.msra.mxu0 0.0
        %1687 = vmatprep.subr.mxu0 0.0
        %1688 = vmatpush1.msra.mxu0 0.0
        %1689 = vmatprep.subr.mxu0 0.0
        %1690 = vmatpush1.msra.mxu0 0.0
        %1691 = vmatprep.subr.mxu0 0.0
        %1692 = vmatpush1.msra.mxu0 0.0
        %1693 = vmatprep.subr.mxu0 0.0
        %1694 = vmatpush1.msra.mxu0 0.0
        %1695 = vmatprep.subr.mxu0 0.0
        %1696 = vmatpush1.msra.mxu0 0.0
        %1697 = vmatprep.subr.mxu0 0.0
        %1698 = vmatpush1.msra.mxu0 0.0
        %1699 = vmatprep.subr.mxu0 0.0
        %1700 = vmatpush1.msra.mxu0 0.0
        %1701 = vmatprep.subr.mxu0 0.0
        %1702 = vmatpush1.msra.mxu0 0.0
        %1703 = vmatprep.mubr.f32.mxu0 0.0
        %1704 = vmatmul.mubr.f32.gmra.mrb[0].mxu0 %v1552
        %v1705 = vpop.f32.mrb[0].mxu0
        %v1706 = vadd.f32 %v1622, %v1705
        %v1707 = vpop.f32.mrb[0].mxu0
        %v1708 = vadd.f32 %v1626, %v1707
        %1709 = vdwg.mxu0
        %1710 = vmatprep.subr.mxu0 %v1556
        %1711 = vmatpush1.msra.mxu0 %v1555
        %1712 = vmatprep.subr.mxu0 %v1560
        %1713 = vmatpush1.msra.mxu0 %v1559
        %1714 = vmatprep.subr.mxu0 %v1564
        %1715 = vmatpush1.msra.mxu0 %v1563
        %1716 = vmatprep.subr.mxu0 %v1568
        %1717 = vmatpush1.msra.mxu0 %v1567
        %1718 = vmatprep.subr.mxu0 %v1572
        %1719 = vmatpush1.msra.mxu0 %v1571
        %1720 = vmatprep.subr.mxu0 %v1576
        %1721 = vmatpush1.msra.mxu0 %v1575
        %1722 = vmatprep.subr.mxu0 %v1580
        %1723 = vmatpush1.msra.mxu0 %v1579
        %1724 = vmatprep.subr.mxu0 %v1584
        %1725 = vmatpush1.msra.mxu0 %v1583
        %1726 = vmatprep.subr.mxu0 %v1588
        %1727 = vmatpush1.msra.mxu0 %v1587
        %1728 = vmatprep.subr.mxu0 %v1592
        %1729 = vmatpush1.msra.mxu0 %v1591
        %1730 = vmatprep.subr.mxu0 %v1596
        %1731 = vmatpush1.msra.mxu0 %v1595
        %1732 = vmatprep.subr.mxu0 %v1600
        %1733 = vmatpush1.msra.mxu0 %v1599
        %1734 = vmatprep.subr.mxu0 %v1604
        %1735 = vmatpush1.msra.mxu0 %v1603
        %1736 = vmatprep.subr.mxu0 %v1608
        %1737 = vmatpush1.msra.mxu0 %v1607
        %1738 = vmatprep.subr.mxu0 %v1612
        %1739 = vmatpush1.msra.mxu0 %v1611
        %1740 = vmatprep.subr.mxu0 %v1616
        %1741 = vmatpush1.msra.mxu0 %v1615
        %1742 = vmatprep.subr.mxu0 0.0
        %1743 = vmatpush1.msra.mxu0 0.0
        %1744 = vmatprep.subr.mxu0 0.0
        %1745 = vmatpush1.msra.mxu0 0.0
        %1746 = vmatprep.subr.mxu0 0.0
        %1747 = vmatpush1.msra.mxu0 0.0
        %1748 = vmatprep.subr.mxu0 0.0
        %1749 = vmatpush1.msra.mxu0 0.0
        %1750 = vmatprep.subr.mxu0 0.0
        %1751 = vmatpush1.msra.mxu0 0.0
        %1752 = vmatprep.subr.mxu0 0.0
        %1753 = vmatpush1.msra.mxu0 0.0
        %1754 = vmatprep.subr.mxu0 0.0
        %1755 = vmatpush1.msra.mxu0 0.0
        %1756 = vmatprep.subr.mxu0 0.0
        %1757 = vmatpush1.msra.mxu0 0.0
        %1758 = vmatprep.subr.mxu0 0.0
        %1759 = vmatpush1.msra.mxu0 0.0
        %1760 = vmatprep.subr.mxu0 0.0
        %1761 = vmatpush1.msra.mxu0 0.0
        %1762 = vmatprep.subr.mxu0 0.0
        %1763 = vmatpush1.msra.mxu0 0.0
        %1764 = vmatprep.subr.mxu0 0.0
        %1765 = vmatpush1.msra.mxu0 0.0
        %1766 = vmatprep.subr.mxu0 0.0
        %1767 = vmatpush1.msra.mxu0 0.0
        %1768 = vmatprep.subr.mxu0 0.0
        %1769 = vmatpush1.msra.mxu0 0.0
        %1770 = vmatprep.subr.mxu0 0.0
        %1771 = vmatpush1.msra.mxu0 0.0
        %1772 = vmatprep.subr.mxu0 0.0
        %1773 = vmatpush1.msra.mxu0 0.0
        %1774 = vmatprep.mubr.f32.mxu0 0.0
        %1775 = vmatmul.mubr.f32.gmra.mrb[0].mxu0 %v1552
        %v1776 = vpop.f32.mrb[0].mxu0
        %v1777 = vadd.f32 %v1630, %v1776
        %v1778 = vpop.f32.mrb[0].mxu0
        %v1779 = vadd.f32 %v1634, %v1778
        %1780 = vdwg.mxu0
        %v1781 = vmul.f32 %v1706, 0.5
        %v1782 = vmul.f32 %v1708, 0.5
        %v1783 = vmul.f32 %v1777, 0.5
        %v1784 = vmul.f32 %v1779, 0.5
        %v1785 = vmul.f32 %v1706, %v1706
        %v1786 = vmul.f32 %v1708, %v1708
        %v1787 = vmul.f32 %v1777, %v1777
        %v1788 = vmul.f32 %v1779, %v1779
        %v1789 = vmul.f32 %v1785, %v1706
        %v1790 = vmul.f32 %v1786, %v1708
        %v1791 = vmul.f32 %v1787, %v1777
        %v1792 = vmul.f32 %v1788, %v1779
        %v1793 = vmul.f32 %v1789, 0.044715
        %v1794 = vmul.f32 %v1790, 0.044715
        %v1795 = vmul.f32 %v1791, 0.044715
        %v1796 = vmul.f32 %v1792, 0.044715
        %v1797 = vadd.f32 %v1706, %v1793
        %v1798 = vadd.f32 %v1708, %v1794
        %v1799 = vadd.f32 %v1777, %v1795
        %v1800 = vadd.f32 %v1779, %v1796
        %v1801 = vmul.f32 %v1797, 0.7978846
        %v1802 = vmul.f32 %v1798, 0.7978846
        %v1803 = vmul.f32 %v1799, 0.7978846
        %v1804 = vmul.f32 %v1800, 0.7978846
        %v1805 = vtanh.pop %v1801
        %v1806 = vtanh.pop %v1802
        %v1807 = vtanh.pop %v1803
        %v1808 = vtanh.pop %v1804
        %v1809 = vadd.f32 %v1805, 1.0
        %v1810 = vadd.f32 %v1806, 1.0
        %v1811 = vadd.f32 %v1807, 1.0
        %v1812 = vadd.f32 %v1808, 1.0
        %v1813 = vmul.f32 %v1781, %v1809
        %v1814 = vmul.f32 %v1782, %v1810
        %v1815 = vmul.f32 %v1783, %v1811
        %v1816 = vmul.f32 %v1784, %v1812
        %v1817 = vld [vmem:[#allocation13] sm:$0xff]
        %v1818 = vld [vmem:[#allocation13 + $0x8] sm:$0xff]
        %v1819 = vld [vmem:[#allocation13 + $0x10] sm:$0xff]
        %v1820 = vld [vmem:[#allocation13 + $0x18] sm:$0xff]
        %v1821 = vld [vmem:[#allocation13 + $0x20] sm:$0xff]
        %v1822 = vld [vmem:[#allocation13 + $0x28] sm:$0xff]
        %v1823 = vld [vmem:[#allocation13 + $0x30] sm:$0xff]
        %v1824 = vld [vmem:[#allocation13 + $0x38] sm:$0xff]
        %v1825 = vld [vmem:[#allocation13 + $0x40] sm:$0xff]
        %v1826 = vld [vmem:[#allocation13 + $0x48] sm:$0xff]
        %v1827 = vld [vmem:[#allocation13 + $0x50] sm:$0xff]
        %v1828 = vld [vmem:[#allocation13 + $0x58] sm:$0xff]
        %v1829 = vld [vmem:[#allocation13 + $0x60] sm:$0xff]
        %v1830 = vld [vmem:[#allocation13 + $0x68] sm:$0xff]
        %v1831 = vld [vmem:[#allocation13 + $0x70] sm:$0xff]
        %v1832 = vld [vmem:[#allocation13 + $0x78] sm:$0xff]
        %v1833 = vld [vmem:[#allocation13 + $0x80] sm:$0xff]
        %v1834 = vld [vmem:[#allocation13 + $0x88] sm:$0xff]
        %v1835 = vld [vmem:[#allocation13 + $0x90] sm:$0xff]
        %v1836 = vld [vmem:[#allocation13 + $0x98] sm:$0xff]
        %v1837 = vld [vmem:[#allocation13 + $0xa0] sm:$0xff]
        %v1838 = vld [vmem:[#allocation13 + $0xa8] sm:$0xff]
        %v1839 = vld [vmem:[#allocation13 + $0xb0] sm:$0xff]
        %v1840 = vld [vmem:[#allocation13 + $0xb8] sm:$0xff]
        %v1841 = vld [vmem:[#allocation13 + $0xc0] sm:$0xff]
        %v1842 = vld [vmem:[#allocation13 + $0xc8] sm:$0xff]
        %v1843 = vld [vmem:[#allocation13 + $0xd0] sm:$0xff]
        %v1844 = vld [vmem:[#allocation13 + $0xd8] sm:$0xff]
        %v1845 = vld [vmem:[#allocation13 + $0xe0] sm:$0xff]
        %v1846 = vld [vmem:[#allocation13 + $0xe8] sm:$0xff]
        %v1847 = vld [vmem:[#allocation13 + $0xf0] sm:$0xff]
        %v1848 = vld [vmem:[#allocation13 + $0xf8] sm:$0xff]
        %v1849 = vld [vmem:[#allocation13 + $0x100] sm:$0xff]
        %v1850 = vld [vmem:[#allocation13 + $0x108] sm:$0xff]
        %v1851 = vld [vmem:[#allocation13 + $0x110] sm:$0xff]
        %v1852 = vld [vmem:[#allocation13 + $0x118] sm:$0xff]
        %v1853 = vld [vmem:[#allocation13 + $0x120] sm:$0xff]
        %v1854 = vld [vmem:[#allocation13 + $0x128] sm:$0xff]
        %v1855 = vld [vmem:[#allocation13 + $0x130] sm:$0xff]
        %v1856 = vld [vmem:[#allocation13 + $0x138] sm:$0xff]
        %v1857 = vld [vmem:[#allocation13 + $0x140] sm:$0xff]
        %v1858 = vld [vmem:[#allocation13 + $0x148] sm:$0xff]
        %v1859 = vld [vmem:[#allocation13 + $0x150] sm:$0xff]
        %v1860 = vld [vmem:[#allocation13 + $0x158] sm:$0xff]
        %v1861 = vld [vmem:[#allocation13 + $0x160] sm:$0xff]
        %v1862 = vld [vmem:[#allocation13 + $0x168] sm:$0xff]
        %v1863 = vld [vmem:[#allocation13 + $0x170] sm:$0xff]
        %v1864 = vld [vmem:[#allocation13 + $0x178] sm:$0xff]
        %v1865 = vld [vmem:[#allocation13 + $0x180] sm:$0xff]
        %v1866 = vld [vmem:[#allocation13 + $0x188] sm:$0xff]
        %v1867 = vld [vmem:[#allocation13 + $0x190] sm:$0xff]
        %v1868 = vld [vmem:[#allocation13 + $0x198] sm:$0xff]
        %v1869 = vld [vmem:[#allocation13 + $0x1a0] sm:$0xff]
        %v1870 = vld [vmem:[#allocation13 + $0x1a8] sm:$0xff]
        %v1871 = vld [vmem:[#allocation13 + $0x1b0] sm:$0xff]
        %v1872 = vld [vmem:[#allocation13 + $0x1b8] sm:$0xff]
        %v1873 = vld [vmem:[#allocation13 + $0x1c0] sm:$0xff]
        %v1874 = vld [vmem:[#allocation13 + $0x1c8] sm:$0xff]
        %v1875 = vld [vmem:[#allocation13 + $0x1d0] sm:$0xff]
        %v1876 = vld [vmem:[#allocation13 + $0x1d8] sm:$0xff]
        %v1877 = vld [vmem:[#allocation13 + $0x1e0] sm:$0xff]
        %v1878 = vld [vmem:[#allocation13 + $0x1e8] sm:$0xff]
        %v1879 = vld [vmem:[#allocation13 + $0x1f0] sm:$0xff]
        %v1880 = vld [vmem:[#allocation13 + $0x1f8] sm:$0xff]
        %v1881 = vld [vmem:[%s11] sm:$0x1]
        %v1883 = vlaneseq
        %v1884 = vshrl.u32 %v1883, 7
        %v1885 = vsub.s32 0, %v1884
        %v1886 = vrot.slane %v1881, %v1885
        %1888 = vmatprep.subr.mxu0 0.0
        %1889 = vmatpush1.msra.mxu0 %v1817
        %1890 = vmatprep.subr.mxu0 0.0
        %1891 = vmatpush1.msra.mxu0 %v1818
        %1892 = vmatprep.subr.mxu0 0.0
        %1893 = vmatpush1.msra.mxu0 %v1819
        %1894 = vmatprep.subr.mxu0 0.0
        %1895 = vmatpush1.msra.mxu0 %v1820
        %1896 = vmatprep.subr.mxu0 0.0
        %1897 = vmatpush1.msra.mxu0 %v1821
        %1898 = vmatprep.subr.mxu0 0.0
        %1899 = vmatpush1.msra.mxu0 %v1822
        %1900 = vmatprep.subr.mxu0 0.0
        %1901 = vmatpush1.msra.mxu0 %v1823
        %1902 = vmatprep.subr.mxu0 0.0
        %1903 = vmatpush1.msra.mxu0 %v1824
        %1904 = vmatprep.subr.mxu0 0.0
        %1905 = vmatpush1.msra.mxu0 %v1825
        %1906 = vmatprep.subr.mxu0 0.0
        %1907 = vmatpush1.msra.mxu0 %v1826
        %1908 = vmatprep.subr.mxu0 0.0
        %1909 = vmatpush1.msra.mxu0 %v1827
        %1910 = vmatprep.subr.mxu0 0.0
        %1911 = vmatpush1.msra.mxu0 %v1828
        %1912 = vmatprep.subr.mxu0 0.0
        %1913 = vmatpush1.msra.mxu0 %v1829
        %1914 = vmatprep.subr.mxu0 0.0
        %1915 = vmatpush1.msra.mxu0 %v1830
        %1916 = vmatprep.subr.mxu0 0.0
        %1917 = vmatpush1.msra.mxu0 %v1831
        %1918 = vmatprep.subr.mxu0 0.0
        %1919 = vmatpush1.msra.mxu0 %v1832
        %1920 = vmatprep.subr.mxu0 0.0
        %1921 = vmatpush1.msra.mxu0 %v1833
        %1922 = vmatprep.subr.mxu0 0.0
        %1923 = vmatpush1.msra.mxu0 %v1834
        %1924 = vmatprep.subr.mxu0 0.0
        %1925 = vmatpush1.msra.mxu0 %v1835
        %1926 = vmatprep.subr.mxu0 0.0
        %1927 = vmatpush1.msra.mxu0 %v1836
        %1928 = vmatprep.subr.mxu0 0.0
        %1929 = vmatpush1.msra.mxu0 %v1837
        %1930 = vmatprep.subr.mxu0 0.0
        %1931 = vmatpush1.msra.mxu0 %v1838
        %1932 = vmatprep.subr.mxu0 0.0
        %1933 = vmatpush1.msra.mxu0 %v1839
        %1934 = vmatprep.subr.mxu0 0.0
        %1935 = vmatpush1.msra.mxu0 %v1840
        %1936 = vmatprep.subr.mxu0 0.0
        %1937 = vmatpush1.msra.mxu0 %v1841
        %1938 = vmatprep.subr.mxu0 0.0
        %1939 = vmatpush1.msra.mxu0 %v1842
        %1940 = vmatprep.subr.mxu0 0.0
        %1941 = vmatpush1.msra.mxu0 %v1843
        %1942 = vmatprep.subr.mxu0 0.0
        %1943 = vmatpush1.msra.mxu0 %v1844
        %1944 = vmatprep.subr.mxu0 0.0
        %1945 = vmatpush1.msra.mxu0 %v1845
        %1946 = vmatprep.subr.mxu0 0.0
        %1947 = vmatpush1.msra.mxu0 %v1846
        %1948 = vmatprep.subr.mxu0 0.0
        %1949 = vmatpush1.msra.mxu0 %v1847
        %1950 = vmatprep.subr.mxu0 0.0
        %1951 = vmatpush1.msra.mxu0 %v1848
        %1952 = vmatprep.mubr.f32.mxu0 %v1814
        %1953 = vmatmul.mubr.f32.gmra.mrb[0].mxu0 %v1813
        %v1954 = vpop.f32.mrb[0].mxu0
        %v1955 = vadd.f32 %v1886, %v1954
        %v1956 = vpop.f32.mrb[0].mxu0
        %1957 = vdwg.mxu0
        %1958 = vmatprep.subr.mxu0 0.0
        %1959 = vmatpush1.msra.mxu0 %v1849
        %1960 = vmatprep.subr.mxu0 0.0
        %1961 = vmatpush1.msra.mxu0 %v1850
        %1962 = vmatprep.subr.mxu0 0.0
        %1963 = vmatpush1.msra.mxu0 %v1851
        %1964 = vmatprep.subr.mxu0 0.0
        %1965 = vmatpush1.msra.mxu0 %v1852
        %1966 = vmatprep.subr.mxu0 0.0
        %1967 = vmatpush1.msra.mxu0 %v1853
        %1968 = vmatprep.subr.mxu0 0.0
        %1969 = vmatpush1.msra.mxu0 %v1854
        %1970 = vmatprep.subr.mxu0 0.0
        %1971 = vmatpush1.msra.mxu0 %v1855
        %1972 = vmatprep.subr.mxu0 0.0
        %1973 = vmatpush1.msra.mxu0 %v1856
        %1974 = vmatprep.subr.mxu0 0.0
        %1975 = vmatpush1.msra.mxu0 %v1857
        %1976 = vmatprep.subr.mxu0 0.0
        %1977 = vmatpush1.msra.mxu0 %v1858
        %1978 = vmatprep.subr.mxu0 0.0
        %1979 = vmatpush1.msra.mxu0 %v1859
        %1980 = vmatprep.subr.mxu0 0.0
        %1981 = vmatpush1.msra.mxu0 %v1860
        %1982 = vmatprep.subr.mxu0 0.0
        %1983 = vmatpush1.msra.mxu0 %v1861
        %1984 = vmatprep.subr.mxu0 0.0
        %1985 = vmatpush1.msra.mxu0 %v1862
        %1986 = vmatprep.subr.mxu0 0.0
        %1987 = vmatpush1.msra.mxu0 %v1863
        %1988 = vmatprep.subr.mxu0 0.0
        %1989 = vmatpush1.msra.mxu0 %v1864
        %1990 = vmatprep.subr.mxu0 0.0
        %1991 = vmatpush1.msra.mxu0 %v1865
        %1992 = vmatprep.subr.mxu0 0.0
        %1993 = vmatpush1.msra.mxu0 %v1866
        %1994 = vmatprep.subr.mxu0 0.0
        %1995 = vmatpush1.msra.mxu0 %v1867
        %1996 = vmatprep.subr.mxu0 0.0
        %1997 = vmatpush1.msra.mxu0 %v1868
        %1998 = vmatprep.subr.mxu0 0.0
        %1999 = vmatpush1.msra.mxu0 %v1869
        %2000 = vmatprep.subr.mxu0 0.0
        %2001 = vmatpush1.msra.mxu0 %v1870
        %2002 = vmatprep.subr.mxu0 0.0
        %2003 = vmatpush1.msra.mxu0 %v1871
        %2004 = vmatprep.subr.mxu0 0.0
        %2005 = vmatpush1.msra.mxu0 %v1872
        %2006 = vmatprep.subr.mxu0 0.0
        %2007 = vmatpush1.msra.mxu0 %v1873
        %2008 = vmatprep.subr.mxu0 0.0
        %2009 = vmatpush1.msra.mxu0 %v1874
        %2010 = vmatprep.subr.mxu0 0.0
        %2011 = vmatpush1.msra.mxu0 %v1875
        %2012 = vmatprep.subr.mxu0 0.0
        %2013 = vmatpush1.msra.mxu0 %v1876
        %2014 = vmatprep.subr.mxu0 0.0
        %2015 = vmatpush1.msra.mxu0 %v1877
        %2016 = vmatprep.subr.mxu0 0.0
        %2017 = vmatpush1.msra.mxu0 %v1878
        %2018 = vmatprep.subr.mxu0 0.0
        %2019 = vmatpush1.msra.mxu0 %v1879
        %2020 = vmatprep.subr.mxu0 0.0
        %2021 = vmatpush1.msra.mxu0 %v1880
        %2022 = vmatprep.mubr.f32.mxu0 %v1816
        %2023 = vmatmul.mubr.f32.gmra.mrb[0].mxu0 %v1815
        %v2024 = vpop.f32.mrb[0].mxu0
        %v2025 = vadd.f32 %v1955, %v2024
        %v2026 = vpop.f32.mrb[0].mxu0
        %2027 = vdwg.mxu0
        %v2028 = vadd.f32 %v1524, %v2025
        %2029 = vst [vmem:[%s500] sm:$0xff] %v2028
        %s2030 = sand.u32 %s310, 1
        %s2031 = scalar_lea.sflag [#allocation7], %s2030
        %s2032 = sand.u32 %s310, 1
        %s2033 = smul.addr %s2032, 8
        %s2034 = scalar_lea.vmem [#allocation14], %s2033
        // Predicated region
        $region93: #{tpu_custom_call.1} parent=67 // pred_check
          %p2035 = pneg %p320
        $region94: #{tpu_custom_call.1} parent=67 // pred_check_branch
          %2037 = sbr.rel (%p2035) target = $region96
        $region95: #{tpu_custom_call.1} parent=67 // pred_region
          %s2039 = ssub.s32 128, 128
          %2040 = vsyncadd %s2031, %s2039
          %s2041 = sadd.s32 %s36, %s35
          %s2042 = smul.addr %s2041, 128
          %s2043 = scalar_lea.hbm %s12, %s2042
          %s2045 = sshll.u32 %s2034, 4
          %s2046 = int_to_ptr.vmem [resolvable:$true] %s2045
          %2048 = dma.vmem_to_hbm [thread:$0]  %s2046, 128, %s2043, %s2031
        $region96: #{tpu_custom_call.1} parent=67 // pred_fallthru
          _
      $region68: #{tpu_custom_call.1} parent=5 // pred_fallthru
        _
      %p2049 = scmp.le.s32.totalorder 2, %s26
      // Predicated region
      $region97: #{tpu_custom_call.1} parent=5 // pred_check
        %p2050 = pneg %p2049
      $region98: #{tpu_custom_call.1} parent=5 // pred_check_branch
        %2052 = sbr.rel (%p2050) target = $region100
      $region99: #{tpu_custom_call.1} parent=5 // pred_region
        %s2053 = ssub.s32 %s26, 2
        // Predicated region
        $region101: #{tpu_custom_call.1} parent=99 // pred_check
          %p2054 = pneg %p326
        $region102: #{tpu_custom_call.1} parent=99 // pred_check_branch
          %2056 = sbr.rel (%p2054) target = $region104
        $region103: #{tpu_custom_call.1} parent=99 // pred_region
          %s2057 = sand.u32 %s311, 1
          %s2058 = scalar_lea.sflag [#allocation7], %s2057
          %s2059 = sand.u32 %s311, 1
          %s2060 = smul.addr %s2059, 8
          %s2061 = scalar_lea.vmem [#allocation14], %s2060
          %2062 = dma.done %s2058, 128
        $region104: #{tpu_custom_call.1} parent=99 // pred_fallthru
          _
      $region100: #{tpu_custom_call.1} parent=5 // pred_fallthru
        _
    $region6: #{tpu_custom_call.1} parent=1 // loop_footer
      %s30 = sadd.s32 1, %s26
    $region7: #{tpu_custom_call.1} parent=1 // loop_footer_branch
      %25 = sbr.rel target = $region3
    $region8: #{tpu_custom_call.1} parent=1 // loop_exit
      _
    %2063 = vsyncpa [#allocation6], 1
    %s2064 = scalar_lea.sflag [#allocation6], 1
    %2065 = vsyncpa %s2064, 1
    %2066 = vsyncpa [#allocation9], 1
    %2067 = vsyncpa [#allocation12], 1
    %2068 = vsyncpa [#allocation7], 1
    %s2069 = scalar_lea.sflag [#allocation7], 1
    %2070 = vsyncpa %s2069, 1

</llo_original>
